<compile_context>
chip_gen: v6e
topology: v6e:2x2x1
jax: 0.10.0
libtpu: 0.0.40
codegen_flags: <defaults>
</compile_context>

<pallas_src>
import functools

import jax
import jax.numpy as jnp
from jax.experimental import pallas as pl
from jax.experimental.pallas import tpu as pltpu


EDGE_FEATURE_DIMS = [5, 6, 2]          # get_edge_feature_dims()
NUM_FEATS = len(EDGE_FEATURE_DIMS)
KPAD = 128                             # fused (stacked + padded) vocab axis -> full MXU K, full lane width


def _feature_offsets(feat_dims):
    offs = [0]
    for d in feat_dims[:-1]:
        offs.append(offs[-1] + d)
    return offs                         # [0, 5, 11]


def _edge_encoder_kernel(idx_ref, w_ref, out_ref, *, feat_dims):
    # idx_ref : (TE, 3)   int32   raw per-feature indices
    # w_ref   : (128, 3D) float32 block-diagonal stacked tables (VMEM-resident across the grid)
    # out_ref : (TE, 3D)  float32
    te = idx_ref.shape[0]
    kpad = w_ref.shape[0]
    offs = _feature_offsets(feat_dims)

    idx = idx_ref[...]                                               # (TE, 3)
    lane = jax.lax.broadcasted_iota(jnp.int32, (te, kpad), 1)        # (TE, 128)

    # Fused one-hot: feature i lights lane (idx[:, i] + off_i).  For in-range indices each
    # per-feature compare only ever hits lanes inside its own block-diagonal slot, so a plain
    # OR of the 3 equality masks is exact (no slot range masks / where-chain needed).
    hot = lane == (idx[:, 0:1] + offs[0])
    for i in range(1, len(feat_dims)):
        hot = hot | (lane == (idx[:, i:i + 1] + offs[i]))
    onehot = hot.astype(jnp.float32)                                 # (TE, 128)

    # Single MXU push with full K=128, single lane-dense store of all 3 embeddings.
    emb = jnp.dot(onehot, w_ref[...], preferred_element_type=jnp.float32)   # (TE, 3D)
    out_ref[...] = emb.astype(out_ref.dtype)
    # TODO(synk): torch.nn.Embedding raises on out-of-range indices; this kernel silently maps
    # them into whichever slot they land in (undefined inputs -> undefined output row).


def edge_encoder_forward(edge_attr, blockdiag_w, *, emb_dim, tile_e=1024,
                         out_dtype=jnp.float32):
    """edge_attr: (E, 3) integer per-feature indices. Returns (E, 3*emb_dim)."""
    E, nf = edge_attr.shape
    assert nf == NUM_FEATS
    assert tile_e % 8 == 0, "tile_e must be a sublane multiple"

    out_dim = NUM_FEATS * emb_dim
    kpad = blockdiag_w.shape[0]

    # Pad the edge axis to a multiple of tile_e (padded rows use index 0 and are sliced off).
    num_tiles = pl.cdiv(E, tile_e)
    e_pad = num_tiles * tile_e
    idx = edge_attr.astype(jnp.int32)
    if e_pad != E:
        idx = jnp.pad(idx, ((0, e_pad - E), (0, 0)))

    kernel = functools.partial(_edge_encoder_kernel, feat_dims=tuple(EDGE_FEATURE_DIMS))

    out = pl.pallas_call(
        kernel,
        out_shape=jax.ShapeDtypeStruct((e_pad, out_dim), out_dtype),
        grid_spec=pltpu.PrefetchScalarGridSpec(
            num_scalar_prefetch=0,
            grid=(num_tiles,),
            in_specs=[
                pl.BlockSpec((tile_e, NUM_FEATS), lambda i: (i, 0)),   # index tile
                pl.BlockSpec((kpad, out_dim), lambda i: (0, 0)),       # block-diag table, resident
            ],
            out_specs=pl.BlockSpec((tile_e, out_dim), lambda i: (i, 0)),
        ),
        compiler_params=pltpu.CompilerParams(
            dimension_semantics=("parallel",),                         # shards edge tiles on v7x's 2 TCs
        ),
    )(idx, blockdiag_w)

    if e_pad != E:
        out = out[:E]
    return out


def init_tables(key, emb_dim):
    """Xavier-uniform init per table (matching torch.nn.init.xavier_uniform_)."""
    tables = []
    for i, dim in enumerate(EDGE_FEATURE_DIMS):
        k = jax.random.fold_in(key, i)
        a = (6.0 / (dim + emb_dim)) ** 0.5
        tables.append(jax.random.uniform(k, (dim, emb_dim), jnp.float32, minval=-a, maxval=a))
    return tables


def build_blockdiag_weights(tables, emb_dim, kpad=KPAD):
    """Stack the 3 tables block-diagonally: (kpad, 3*emb_dim). Done once at param-prep time."""
    out_dim = len(tables) * emb_dim
    w = jnp.zeros((kpad, out_dim), jnp.float32)
    off = 0
    for i, t in enumerate(tables):
        d = t.shape[0]
        w = w.at[off:off + d, i * emb_dim:(i + 1) * emb_dim].set(t)
        off += d
    return w


if __name__ == "__main__":
    key = jax.random.PRNGKey(0)
    emb_dim = 32
    E = 2000            # deliberately NOT a tile multiple: exercises padding + slice-back
    tile_e = 512        # 4 grid steps; out block = 512*96*4B = 192 KiB, safe on v7x 64 MiB VMEM

    wkey, xkey = jax.random.split(key)
    tables = init_tables(wkey, emb_dim)
    w_blockdiag = build_blockdiag_weights(tables, emb_dim)

    # Deterministic edge_attr with each column in-range for its table.
    cols = []
    for i, dim in enumerate(EDGE_FEATURE_DIMS):
        ck = jax.random.fold_in(xkey, i)
        cols.append(jax.random.randint(ck, (E, 1), 0, dim, dtype=jnp.int32))
    edge_attr = jnp.concatenate(cols, axis=1)  # (E, 3)

    out = edge_encoder_forward(edge_attr, w_blockdiag, emb_dim=emb_dim, tile_e=tile_e)
    out = jax.block_until_ready(out)

    # Reference: plain JAX gather + concat (same semantics as the torch forward).
    ref = jnp.concatenate(
        [jnp.take(tables[i], edge_attr[:, i], axis=0) for i in range(NUM_FEATS)], axis=1
    )
    assert out.shape == (E, NUM_FEATS * emb_dim)
    assert jnp.allclose(out, ref, atol=1e-6), "mismatch vs reference"

    print("KERNEL_OK")
</pallas_src>

<mosaic_0001>
module attributes {stable_mosaic.version = 11 : i64} {
  func.func @_edge_encoder_kernel(%arg0: i32, %arg1: memref<512x3xi32, #tpu.memory_space<vmem>>, %arg2: memref<128x96xf32, #tpu.memory_space<vmem>>, %arg3: memref<512x96xf32, #tpu.memory_space<vmem>>) attributes {dimension_semantics = [#tpu.dimension_semantics<parallel>], iteration_bounds = array<i64: 4>, scalar_prefetch = 0 : i64, scratch_operands = 0 : i64, tpu.core_type = #tpu.core_type<tc>, window_params = [{transform_indices = @transform_0, window_bounds = array<i64: 512, 3>}, {pipeline_mode = #tpu.pipeline_mode<synchronous>, transform_indices = @transform_1, window_bounds = array<i64: 128, 96>}, {transform_indices = @transform_2, window_bounds = array<i64: 512, 96>}]} {
    %c0 = arith.constant 0 : index
    %c0_0 = arith.constant 0 : index
    %0 = vector.load %arg1[%c0, %c0_0] : memref<512x3xi32, #tpu.memory_space<vmem>>, vector<512x3xi32>
    %1 = tpu.iota {dimensions = array<i32: 1>} : vector<512x128xi32>
    %2 = vector.extract_strided_slice %0 {offsets = [0, 0], sizes = [512, 1], strides = [1, 1]} : vector<512x3xi32> to vector<512x1xi32>
    %c0_i32 = arith.constant 0 : i32
    %3 = vector.broadcast %c0_i32 : i32 to vector<512x1xi32>
    %4 = arith.addi %2, %3 : vector<512x1xi32>
    %5 = vector.broadcast %4 : vector<512x1xi32> to vector<512x128xi32>
    %6 = arith.cmpi eq, %1, %5 : vector<512x128xi32>
    %7 = vector.extract_strided_slice %0 {offsets = [0, 1], sizes = [512, 1], strides = [1, 1]} : vector<512x3xi32> to vector<512x1xi32>
    %c5_i32 = arith.constant 5 : i32
    %8 = vector.broadcast %c5_i32 : i32 to vector<512x1xi32>
    %9 = arith.addi %7, %8 : vector<512x1xi32>
    %10 = vector.broadcast %9 : vector<512x1xi32> to vector<512x128xi32>
    %11 = arith.cmpi eq, %1, %10 : vector<512x128xi32>
    %12 = arith.ori %6, %11 : vector<512x128xi1>
    %13 = vector.extract_strided_slice %0 {offsets = [0, 2], sizes = [512, 1], strides = [1, 1]} : vector<512x3xi32> to vector<512x1xi32>
    %c11_i32 = arith.constant 11 : i32
    %14 = vector.broadcast %c11_i32 : i32 to vector<512x1xi32>
    %15 = arith.addi %13, %14 : vector<512x1xi32>
    %16 = vector.broadcast %15 : vector<512x1xi32> to vector<512x128xi32>
    %17 = arith.cmpi eq, %1, %16 : vector<512x128xi32>
    %18 = arith.ori %12, %17 : vector<512x128xi1>
    %19 = arith.extui %18 : vector<512x128xi1> to vector<512x128xi32>
    %20 = arith.sitofp %19 : vector<512x128xi32> to vector<512x128xf32>
    %c0_1 = arith.constant 0 : index
    %c0_2 = arith.constant 0 : index
    %21 = vector.load %arg2[%c0_1, %c0_2] : memref<128x96xf32, #tpu.memory_space<vmem>>, vector<128x96xf32>
    %cst = arith.constant dense<0.000000e+00> : vector<512x96xf32>
    %22 = tpu.matmul %20, %21, %cst {dimension_numbers = #tpu.dot_dimension_numbers<[1], [0], [0], [1], [0, 0, 1, 1], [], []>} : vector<512x128xf32>, vector<128x96xf32>, vector<512x96xf32> -> vector<512x96xf32>
    %c0_3 = arith.constant 0 : index
    %c0_4 = arith.constant 0 : index
    %23 = vector.load %arg3[%c0_3, %c0_4] : memref<512x96xf32, #tpu.memory_space<vmem>>, vector<512x96xf32>
    tpu.vector_store %arg3[%c0_3, %c0_4], %22 {strides = array<i32>} : memref<512x96xf32, #tpu.memory_space<vmem>>, vector<512x96xf32>,
    return
  }
  func.func @transform_0(%arg0: i32) -> (i32, i32) {
    %c0_i32 = arith.constant 0 : i32
    %c0_i32_0 = arith.constant 0 : i32
    return %arg0, %c0_i32 : i32, i32
  }
  func.func @transform_1(%arg0: i32) -> (i32, i32) {
    %c0_i32 = arith.constant 0 : i32
    %c0_i32_0 = arith.constant 0 : i32
    %c0_i32_1 = arith.constant 0 : i32
    return %c0_i32, %c0_i32_0 : i32, i32
  }
  func.func @transform_2(%arg0: i32) -> (i32, i32) {
    %c0_i32 = arith.constant 0 : i32
    %c0_i32_0 = arith.constant 0 : i32
    return %arg0, %c0_i32 : i32, i32
  }
}

</mosaic_0001>

<llo_original>
// kernel: tpu_custom_call.1
$region0: #{tpu_custom_call.1}
  #allocation0 [shape = 'u32[]', space=smem, size = 0x4, offset = 0x4, fixed_abs, tag = 'smem constant byte address 0x4 - core index']
  #allocation1 [shape = 'u32[144,128]{1,0:T(1,128)}', space=vmem, size = 0x12000, scoped, tag = 'internal scratch']
  %s0 = inlined_call_operand.vmem [shape: s32[2048,3], index: 0, kind: input, shape index: {}]
  %s1 = inlined_call_operand.vmem [shape: f32[128,96], index: 1, kind: input, shape index: {}]
  %s2 = inlined_call_operand.vmem [shape: f32[2048,96], index: 2, kind: output, shape index: {}]
  %s3 = sld [smem:[#allocation0]]
  $region41: #{tpu_custom_call.1} parent=0
    _
  %s5 = ssub.s32 1, %s3
  %s6 = scalar_select 0, %s5, %s3
  loop: start=0, step=1, limit=6
  $region2: #{tpu_custom_call.1} parent=0 // loop_pre_header
    _
  $region3: #{tpu_custom_call.1} parent=0 // loop_header
    %s8 = sphi 0, %s12
    %p9 = scmp.ge.s32.totalorder %s8, 6
    %s18 = sphi 0, %s20
    %s21 = sphi 0, %s18
    %s22 = sphi 0, %s21
    %s38 = sphi 0, %s22
    %s42 = sphi 0, %s42
    %s44 = sphi 0, %s42
    %s45 = sphi 0, %s44
    %s59 = sphi 0, %s45
    %s65 = sphi 0, %s67
    %s68 = sphi 0, %s65
    %s69 = sphi 0, %s68
    %s85 = sphi 0, %s69
  $region4: #{tpu_custom_call.1} parent=0 // loop_header_branch
    %11 = sbr.rel (%p9) target = $region8
  $region5: #{tpu_custom_call.1} parent=0 // loop_body
    %s13 = ssub.s32 %s8, 1
    %s14 = ssub.s32 %s8, 2
    %s15 = sadd.s32 %s8, 1
    %s16 = ssub.s32 %s8, %s15
    %p17 = scmp.eq.s32.totalorder %s16, 0
    %s19 = sadd.s32 %s18, 1
    %s20 = scalar_select %p17, %s18, %s19
    %p23 = pneg %p17
    %p24 = scmp.eq.s32.totalorder %s8, 3
    %p25 = por %p23, %p24
    %p26 = scmp.ne.s32.totalorder %s18, %s21
    %p27 = scmp.eq.s32.totalorder %s8, 0
    %p28 = por %p26, %p27
    %p29 = scmp.ne.s32.totalorder %s18, %s21
    %p30 = scmp.eq.s32.totalorder %s13, 3
    %p31 = por %p29, %p30
    %p32 = scmp.ne.s32.totalorder %s21, %s22
    %p33 = scmp.eq.s32.totalorder %s13, 0
    %p34 = por %p32, %p33
    %p35 = scmp.ne.s32.totalorder %s21, %s22
    %p36 = scmp.eq.s32.totalorder %s14, 3
    %p37 = por %p35, %p36
    %p39 = scmp.ne.s32.totalorder %s22, %s38
    %p40 = scmp.eq.s32.totalorder %s14, 0
    %p41 = por %p39, %p40
    %s43 = sadd.s32 %s42, 1
    %p46 = scmp.eq.s32.totalorder %s8, 3
    %p47 = scmp.ne.s32.totalorder %s42, %s44
    %p48 = scmp.eq.s32.totalorder %s8, 0
    %p49 = por %p47, %p48
    %p50 = scmp.ne.s32.totalorder %s42, %s44
    %p51 = scmp.eq.s32.totalorder %s13, 3
    %p52 = por %p50, %p51
    %p53 = scmp.ne.s32.totalorder %s44, %s45
    %p54 = scmp.eq.s32.totalorder %s13, 0
    %p55 = por %p53, %p54
    %p56 = scmp.ne.s32.totalorder %s44, %s45
    %p57 = scmp.eq.s32.totalorder %s14, 3
    %p58 = por %p56, %p57
    %p60 = scmp.ne.s32.totalorder %s45, %s59
    %p61 = scmp.eq.s32.totalorder %s14, 0
    %p62 = por %p60, %p61
    %s63 = ssub.s32 %s8, %s15
    %p64 = scmp.eq.s32.totalorder %s63, 0
    %s66 = sadd.s32 %s65, 1
    %s67 = scalar_select %p64, %s65, %s66
    %p70 = pneg %p64
    %p71 = scmp.eq.s32.totalorder %s8, 3
    %p72 = por %p70, %p71
    %p73 = scmp.ne.s32.totalorder %s65, %s68
    %p74 = scmp.eq.s32.totalorder %s8, 0
    %p75 = por %p73, %p74
    %p76 = scmp.ne.s32.totalorder %s65, %s68
    %p77 = scmp.eq.s32.totalorder %s13, 3
    %p78 = por %p76, %p77
    %p79 = scmp.ne.s32.totalorder %s68, %s69
    %p80 = scmp.eq.s32.totalorder %s13, 0
    %p81 = por %p79, %p80
    %p82 = scmp.ne.s32.totalorder %s68, %s69
    %p83 = scmp.eq.s32.totalorder %s14, 3
    %p84 = por %p82, %p83
    %p86 = scmp.ne.s32.totalorder %s69, %s85
    %p87 = scmp.eq.s32.totalorder %s14, 0
    %p88 = por %p86, %p87
    %p89 = scmp.le.s32.totalorder 1, %s8
    %p90 = scmp.lt.s32.totalorder %s8, 5
    %p91 = pnand %p89, %p90
    %p92 = pneg %p91
    // Predicated region
    $region9: #{tpu_custom_call.1} parent=5 // pred_check
      _
    $region10: #{tpu_custom_call.1} parent=5 // pred_check_branch
      %94 = sbr.rel (%p91) target = $region12
    $region11: #{tpu_custom_call.1} parent=5 // pred_region
      %s95 = ssub.s32 %s8, 1
      // Predicated region
      $region13: #{tpu_custom_call.1} parent=11 // pred_check
        %p96 = pneg %p55
      $region14: #{tpu_custom_call.1} parent=11 // pred_check_branch
        %98 = sbr.rel (%p96) target = $region16
      $region15: #{tpu_custom_call.1} parent=11 // pred_region
        _
      $region16: #{tpu_custom_call.1} parent=11 // pred_fallthru
        _
    $region12: #{tpu_custom_call.1} parent=5 // pred_fallthru
      _
    %p99 = scmp.lt.s32.totalorder %s8, 4
    // Predicated region
    $region17: #{tpu_custom_call.1} parent=5 // pred_check
      %p100 = pneg %p99
    $region18: #{tpu_custom_call.1} parent=5 // pred_check_branch
      %102 = sbr.rel (%p100) target = $region20
    $region19: #{tpu_custom_call.1} parent=5 // pred_region
      // Predicated region
      $region21: #{tpu_custom_call.1} parent=19 // pred_check
        %p103 = pneg %p28
      $region22: #{tpu_custom_call.1} parent=19 // pred_check_branch
        %105 = sbr.rel (%p103) target = $region24
      $region23: #{tpu_custom_call.1} parent=19 // pred_region
        %s106 = smul.u32 64, %s8
        %p107 = scmp.lt.s32.totalorder %s106, 255
        %s108 = scalar_select %p107, %s106, 255
        %s109 = smul.addr %s108, 8
        %s110 = scalar_lea.vmem %s0, %s109
        %s111 = smul.u32 64, %s8
      $region24: #{tpu_custom_call.1} parent=19 // pred_fallthru
        _
    $region20: #{tpu_custom_call.1} parent=5 // pred_fallthru
      _
    %p112 = scmp.le.s32.totalorder 1, %s8
    %p113 = scmp.lt.s32.totalorder %s8, 5
    %p114 = pnand %p112, %p113
    %p115 = pneg %p114
    // Predicated region
    $region25: #{tpu_custom_call.1} parent=5 // pred_check
      _
    $region26: #{tpu_custom_call.1} parent=5 // pred_check_branch
      %117 = sbr.rel (%p114) target = $region28
    $region27: #{tpu_custom_call.1} parent=5 // pred_region
      %s118 = ssub.s32 %s8, 1
      %s119 = smul.u32 64, %s13
      %p120 = scmp.lt.s32.totalorder %s119, 255
      %s121 = scalar_select %p120, %s119, 255
      %s122 = smul.addr %s121, 8
      %s123 = scalar_lea.vmem %s0, %s122
      %p124 = pneg %p34
      %p125 = pneg %p31
      %p126 = pneg %p55
      %p127 = pneg %p52
      %p128 = pneg %p81
      %p129 = pneg %p78
      %s130 = smul.u32 64, %s13
      %p131 = scmp.lt.s32.totalorder %s130, 255
      %s132 = scalar_select %p131, %s130, 255
      %s133 = smul.addr %s132, 8
      %s134 = scalar_lea.vmem %s2, %s133
      %s135 = smul.u32 64, %s13
      %p136 = scmp.lt.s32.totalorder %s135, 255
      %s137 = scalar_select %p136, %s135, 255
      %s138 = smul.addr %s137, 8
      %s139 = scalar_lea.vmem %s0, %s138
      %s140 = smul.u32 64, %s13
      %s141 = smul.u32 64, %s13
      %p142 = scmp.lt.s32.totalorder %s141, 255
      %s143 = scalar_select %p142, %s141, 255
      %s144 = smul.addr %s143, 8
      %s145 = scalar_lea.vmem %s2, %s144
      %s146 = smul.u32 64, %s13
      %v147 = vld [vmem:[%s139] sm:$0xff]
      %v148 = vld [vmem:[%s139 + $0x8] sm:$0xff]
      %v149 = vld [vmem:[%s139 + $0x10] sm:$0xff]
      %v150 = vld [vmem:[%s139 + $0x18] sm:$0xff]
      %v151 = vld [vmem:[%s139 + $0x20] sm:$0xff]
      %v152 = vld [vmem:[%s139 + $0x28] sm:$0xff]
      %v153 = vld [vmem:[%s139 + $0x30] sm:$0xff]
      %v154 = vld [vmem:[%s139 + $0x38] sm:$0xff]
      %v155 = vld [vmem:[%s139 + $0x40] sm:$0xff]
      %v156 = vld [vmem:[%s139 + $0x48] sm:$0xff]
      %v157 = vld [vmem:[%s139 + $0x50] sm:$0xff]
      %v158 = vld [vmem:[%s139 + $0x58] sm:$0xff]
      %v159 = vld [vmem:[%s139 + $0x60] sm:$0xff]
      %v160 = vld [vmem:[%s139 + $0x68] sm:$0xff]
      %v161 = vld [vmem:[%s139 + $0x70] sm:$0xff]
      %v162 = vld [vmem:[%s139 + $0x78] sm:$0xff]
      %v163 = vld [vmem:[%s139 + $0x80] sm:$0xff]
      %v164 = vld [vmem:[%s139 + $0x88] sm:$0xff]
      %v165 = vld [vmem:[%s139 + $0x90] sm:$0xff]
      %v166 = vld [vmem:[%s139 + $0x98] sm:$0xff]
      %v167 = vld [vmem:[%s139 + $0xa0] sm:$0xff]
      %v168 = vld [vmem:[%s139 + $0xa8] sm:$0xff]
      %v169 = vld [vmem:[%s139 + $0xb0] sm:$0xff]
      %v170 = vld [vmem:[%s139 + $0xb8] sm:$0xff]
      %v171 = vld [vmem:[%s139 + $0xc0] sm:$0xff]
      %v172 = vld [vmem:[%s139 + $0xc8] sm:$0xff]
      %v173 = vld [vmem:[%s139 + $0xd0] sm:$0xff]
      %v174 = vld [vmem:[%s139 + $0xd8] sm:$0xff]
      %v175 = vld [vmem:[%s139 + $0xe0] sm:$0xff]
      %v176 = vld [vmem:[%s139 + $0xe8] sm:$0xff]
      %v177 = vld [vmem:[%s139 + $0xf0] sm:$0xff]
      %v178 = vld [vmem:[%s139 + $0xf8] sm:$0xff]
      %v179 = vld [vmem:[%s139 + $0x100] sm:$0xff]
      %v180 = vld [vmem:[%s139 + $0x108] sm:$0xff]
      %v181 = vld [vmem:[%s139 + $0x110] sm:$0xff]
      %v182 = vld [vmem:[%s139 + $0x118] sm:$0xff]
      %v183 = vld [vmem:[%s139 + $0x120] sm:$0xff]
      %v184 = vld [vmem:[%s139 + $0x128] sm:$0xff]
      %v185 = vld [vmem:[%s139 + $0x130] sm:$0xff]
      %v186 = vld [vmem:[%s139 + $0x138] sm:$0xff]
      %v187 = vld [vmem:[%s139 + $0x140] sm:$0xff]
      %v188 = vld [vmem:[%s139 + $0x148] sm:$0xff]
      %v189 = vld [vmem:[%s139 + $0x150] sm:$0xff]
      %v190 = vld [vmem:[%s139 + $0x158] sm:$0xff]
      %v191 = vld [vmem:[%s139 + $0x160] sm:$0xff]
      %v192 = vld [vmem:[%s139 + $0x168] sm:$0xff]
      %v193 = vld [vmem:[%s139 + $0x170] sm:$0xff]
      %v194 = vld [vmem:[%s139 + $0x178] sm:$0xff]
      %v195 = vld [vmem:[%s139 + $0x180] sm:$0xff]
      %v196 = vld [vmem:[%s139 + $0x188] sm:$0xff]
      %v197 = vld [vmem:[%s139 + $0x190] sm:$0xff]
      %v198 = vld [vmem:[%s139 + $0x198] sm:$0xff]
      %v199 = vld [vmem:[%s139 + $0x1a0] sm:$0xff]
      %v200 = vld [vmem:[%s139 + $0x1a8] sm:$0xff]
      %v201 = vld [vmem:[%s139 + $0x1b0] sm:$0xff]
      %v202 = vld [vmem:[%s139 + $0x1b8] sm:$0xff]
      %v203 = vld [vmem:[%s139 + $0x1c0] sm:$0xff]
      %v204 = vld [vmem:[%s139 + $0x1c8] sm:$0xff]
      %v205 = vld [vmem:[%s139 + $0x1d0] sm:$0xff]
      %v206 = vld [vmem:[%s139 + $0x1d8] sm:$0xff]
      %v207 = vld [vmem:[%s139 + $0x1e0] sm:$0xff]
      %v208 = vld [vmem:[%s139 + $0x1e8] sm:$0xff]
      %v209 = vld [vmem:[%s139 + $0x1f0] sm:$0xff]
      %v210 = vld [vmem:[%s139 + $0x1f8] sm:$0xff]
      %v211 = vlaneseq
      %v212 = vand.u32 %v211, 127
      %213 = vset.pattern.permute.xlu0 0
      %214 = vperm.xlu0 %213, %v147
      %v215 = vpop.permute.xlu0 %214
      %216 = vset.pattern.permute.xlu0 0
      %217 = vperm.xlu0 %216, %v148
      %v218 = vpop.permute.xlu0 %217
      %219 = vset.pattern.permute.xlu0 0
      %220 = vperm.xlu0 %219, %v149
      %v221 = vpop.permute.xlu0 %220
      %222 = vset.pattern.permute.xlu0 0
      %223 = vperm.xlu0 %222, %v150
      %v224 = vpop.permute.xlu0 %223
      %225 = vset.pattern.permute.xlu0 0
      %226 = vperm.xlu0 %225, %v151
      %v227 = vpop.permute.xlu0 %226
      %228 = vset.pattern.permute.xlu0 0
      %229 = vperm.xlu0 %228, %v152
      %v230 = vpop.permute.xlu0 %229
      %231 = vset.pattern.permute.xlu0 0
      %232 = vperm.xlu0 %231, %v153
      %v233 = vpop.permute.xlu0 %232
      %234 = vset.pattern.permute.xlu0 0
      %235 = vperm.xlu0 %234, %v154
      %v236 = vpop.permute.xlu0 %235
      %237 = vset.pattern.permute.xlu0 0
      %238 = vperm.xlu0 %237, %v155
      %v239 = vpop.permute.xlu0 %238
      %240 = vset.pattern.permute.xlu0 0
      %241 = vperm.xlu0 %240, %v156
      %v242 = vpop.permute.xlu0 %241
      %243 = vset.pattern.permute.xlu0 0
      %244 = vperm.xlu0 %243, %v157
      %v245 = vpop.permute.xlu0 %244
      %246 = vset.pattern.permute.xlu0 0
      %247 = vperm.xlu0 %246, %v158
      %v248 = vpop.permute.xlu0 %247
      %249 = vset.pattern.permute.xlu0 0
      %250 = vperm.xlu0 %249, %v159
      %v251 = vpop.permute.xlu0 %250
      %252 = vset.pattern.permute.xlu0 0
      %253 = vperm.xlu0 %252, %v160
      %v254 = vpop.permute.xlu0 %253
      %255 = vset.pattern.permute.xlu0 0
      %256 = vperm.xlu0 %255, %v161
      %v257 = vpop.permute.xlu0 %256
      %258 = vset.pattern.permute.xlu0 0
      %259 = vperm.xlu0 %258, %v162
      %v260 = vpop.permute.xlu0 %259
      %261 = vset.pattern.permute.xlu0 0
      %262 = vperm.xlu0 %261, %v163
      %v263 = vpop.permute.xlu0 %262
      %264 = vset.pattern.permute.xlu0 0
      %265 = vperm.xlu0 %264, %v164
      %v266 = vpop.permute.xlu0 %265
      %267 = vset.pattern.permute.xlu0 0
      %268 = vperm.xlu0 %267, %v165
      %v269 = vpop.permute.xlu0 %268
      %270 = vset.pattern.permute.xlu0 0
      %271 = vperm.xlu0 %270, %v166
      %v272 = vpop.permute.xlu0 %271
      %273 = vset.pattern.permute.xlu0 0
      %274 = vperm.xlu0 %273, %v167
      %v275 = vpop.permute.xlu0 %274
      %276 = vset.pattern.permute.xlu0 0
      %277 = vperm.xlu0 %276, %v168
      %v278 = vpop.permute.xlu0 %277
      %279 = vset.pattern.permute.xlu0 0
      %280 = vperm.xlu0 %279, %v169
      %v281 = vpop.permute.xlu0 %280
      %282 = vset.pattern.permute.xlu0 0
      %283 = vperm.xlu0 %282, %v170
      %v284 = vpop.permute.xlu0 %283
      %285 = vset.pattern.permute.xlu0 0
      %286 = vperm.xlu0 %285, %v171
      %v287 = vpop.permute.xlu0 %286
      %288 = vset.pattern.permute.xlu0 0
      %289 = vperm.xlu0 %288, %v172
      %v290 = vpop.permute.xlu0 %289
      %291 = vset.pattern.permute.xlu0 0
      %292 = vperm.xlu0 %291, %v173
      %v293 = vpop.permute.xlu0 %292
      %294 = vset.pattern.permute.xlu0 0
      %295 = vperm.xlu0 %294, %v174
      %v296 = vpop.permute.xlu0 %295
      %297 = vset.pattern.permute.xlu0 0
      %298 = vperm.xlu0 %297, %v175
      %v299 = vpop.permute.xlu0 %298
      %300 = vset.pattern.permute.xlu0 0
      %301 = vperm.xlu0 %300, %v176
      %v302 = vpop.permute.xlu0 %301
      %303 = vset.pattern.permute.xlu0 0
      %304 = vperm.xlu0 %303, %v177
      %v305 = vpop.permute.xlu0 %304
      %306 = vset.pattern.permute.xlu0 0
      %307 = vperm.xlu0 %306, %v178
      %v308 = vpop.permute.xlu0 %307
      %309 = vset.pattern.permute.xlu0 0
      %310 = vperm.xlu0 %309, %v179
      %v311 = vpop.permute.xlu0 %310
      %312 = vset.pattern.permute.xlu0 0
      %313 = vperm.xlu0 %312, %v180
      %v314 = vpop.permute.xlu0 %313
      %315 = vset.pattern.permute.xlu0 0
      %316 = vperm.xlu0 %315, %v181
      %v317 = vpop.permute.xlu0 %316
      %318 = vset.pattern.permute.xlu0 0
      %319 = vperm.xlu0 %318, %v182
      %v320 = vpop.permute.xlu0 %319
      %321 = vset.pattern.permute.xlu0 0
      %322 = vperm.xlu0 %321, %v183
      %v323 = vpop.permute.xlu0 %322
      %324 = vset.pattern.permute.xlu0 0
      %325 = vperm.xlu0 %324, %v184
      %v326 = vpop.permute.xlu0 %325
      %327 = vset.pattern.permute.xlu0 0
      %328 = vperm.xlu0 %327, %v185
      %v329 = vpop.permute.xlu0 %328
      %330 = vset.pattern.permute.xlu0 0
      %331 = vperm.xlu0 %330, %v186
      %v332 = vpop.permute.xlu0 %331
      %333 = vset.pattern.permute.xlu0 0
      %334 = vperm.xlu0 %333, %v187
      %v335 = vpop.permute.xlu0 %334
      %336 = vset.pattern.permute.xlu0 0
      %337 = vperm.xlu0 %336, %v188
      %v338 = vpop.permute.xlu0 %337
      %339 = vset.pattern.permute.xlu0 0
      %340 = vperm.xlu0 %339, %v189
      %v341 = vpop.permute.xlu0 %340
      %342 = vset.pattern.permute.xlu0 0
      %343 = vperm.xlu0 %342, %v190
      %v344 = vpop.permute.xlu0 %343
      %345 = vset.pattern.permute.xlu0 0
      %346 = vperm.xlu0 %345, %v191
      %v347 = vpop.permute.xlu0 %346
      %348 = vset.pattern.permute.xlu0 0
      %349 = vperm.xlu0 %348, %v192
      %v350 = vpop.permute.xlu0 %349
      %351 = vset.pattern.permute.xlu0 0
      %352 = vperm.xlu0 %351, %v193
      %v353 = vpop.permute.xlu0 %352
      %354 = vset.pattern.permute.xlu0 0
      %355 = vperm.xlu0 %354, %v194
      %v356 = vpop.permute.xlu0 %355
      %357 = vset.pattern.permute.xlu0 0
      %358 = vperm.xlu0 %357, %v195
      %v359 = vpop.permute.xlu0 %358
      %360 = vset.pattern.permute.xlu0 0
      %361 = vperm.xlu0 %360, %v196
      %v362 = vpop.permute.xlu0 %361
      %363 = vset.pattern.permute.xlu0 0
      %364 = vperm.xlu0 %363, %v197
      %v365 = vpop.permute.xlu0 %364
      %366 = vset.pattern.permute.xlu0 0
      %367 = vperm.xlu0 %366, %v198
      %v368 = vpop.permute.xlu0 %367
      %369 = vset.pattern.permute.xlu0 0
      %370 = vperm.xlu0 %369, %v199
      %v371 = vpop.permute.xlu0 %370
      %372 = vset.pattern.permute.xlu0 0
      %373 = vperm.xlu0 %372, %v200
      %v374 = vpop.permute.xlu0 %373
      %375 = vset.pattern.permute.xlu0 0
      %376 = vperm.xlu0 %375, %v201
      %v377 = vpop.permute.xlu0 %376
      %378 = vset.pattern.permute.xlu0 0
      %379 = vperm.xlu0 %378, %v202
      %v380 = vpop.permute.xlu0 %379
      %381 = vset.pattern.permute.xlu0 0
      %382 = vperm.xlu0 %381, %v203
      %v383 = vpop.permute.xlu0 %382
      %384 = vset.pattern.permute.xlu0 0
      %385 = vperm.xlu0 %384, %v204
      %v386 = vpop.permute.xlu0 %385
      %387 = vset.pattern.permute.xlu0 0
      %388 = vperm.xlu0 %387, %v205
      %v389 = vpop.permute.xlu0 %388
      %390 = vset.pattern.permute.xlu0 0
      %391 = vperm.xlu0 %390, %v206
      %v392 = vpop.permute.xlu0 %391
      %393 = vset.pattern.permute.xlu0 0
      %394 = vperm.xlu0 %393, %v207
      %v395 = vpop.permute.xlu0 %394
      %396 = vset.pattern.permute.xlu0 0
      %397 = vperm.xlu0 %396, %v208
      %v398 = vpop.permute.xlu0 %397
      %399 = vset.pattern.permute.xlu0 0
      %400 = vperm.xlu0 %399, %v209
      %v401 = vpop.permute.xlu0 %400
      %402 = vset.pattern.permute.xlu0 0
      %403 = vperm.xlu0 %402, %v210
      %v404 = vpop.permute.xlu0 %403
      %vm405 = vcmp.eq.s32.totalorder %v212, %v215
      %vm406 = vcmp.eq.s32.totalorder %v212, %v218
      %vm407 = vcmp.eq.s32.totalorder %v212, %v221
      %vm408 = vcmp.eq.s32.totalorder %v212, %v224
      %vm409 = vcmp.eq.s32.totalorder %v212, %v227
      %vm410 = vcmp.eq.s32.totalorder %v212, %v230
      %vm411 = vcmp.eq.s32.totalorder %v212, %v233
      %vm412 = vcmp.eq.s32.totalorder %v212, %v236
      %vm413 = vcmp.eq.s32.totalorder %v212, %v239
      %vm414 = vcmp.eq.s32.totalorder %v212, %v242
      %vm415 = vcmp.eq.s32.totalorder %v212, %v245
      %vm416 = vcmp.eq.s32.totalorder %v212, %v248
      %vm417 = vcmp.eq.s32.totalorder %v212, %v251
      %vm418 = vcmp.eq.s32.totalorder %v212, %v254
      %vm419 = vcmp.eq.s32.totalorder %v212, %v257
      %vm420 = vcmp.eq.s32.totalorder %v212, %v260
      %vm421 = vcmp.eq.s32.totalorder %v212, %v263
      %vm422 = vcmp.eq.s32.totalorder %v212, %v266
      %vm423 = vcmp.eq.s32.totalorder %v212, %v269
      %vm424 = vcmp.eq.s32.totalorder %v212, %v272
      %vm425 = vcmp.eq.s32.totalorder %v212, %v275
      %vm426 = vcmp.eq.s32.totalorder %v212, %v278
      %vm427 = vcmp.eq.s32.totalorder %v212, %v281
      %vm428 = vcmp.eq.s32.totalorder %v212, %v284
      %vm429 = vcmp.eq.s32.totalorder %v212, %v287
      %vm430 = vcmp.eq.s32.totalorder %v212, %v290
      %vm431 = vcmp.eq.s32.totalorder %v212, %v293
      %vm432 = vcmp.eq.s32.totalorder %v212, %v296
      %vm433 = vcmp.eq.s32.totalorder %v212, %v299
      %vm434 = vcmp.eq.s32.totalorder %v212, %v302
      %vm435 = vcmp.eq.s32.totalorder %v212, %v305
      %vm436 = vcmp.eq.s32.totalorder %v212, %v308
      %vm437 = vcmp.eq.s32.totalorder %v212, %v311
      %vm438 = vcmp.eq.s32.totalorder %v212, %v314
      %vm439 = vcmp.eq.s32.totalorder %v212, %v317
      %vm440 = vcmp.eq.s32.totalorder %v212, %v320
      %vm441 = vcmp.eq.s32.totalorder %v212, %v323
      %vm442 = vcmp.eq.s32.totalorder %v212, %v326
      %vm443 = vcmp.eq.s32.totalorder %v212, %v329
      %vm444 = vcmp.eq.s32.totalorder %v212, %v332
      %vm445 = vcmp.eq.s32.totalorder %v212, %v335
      %vm446 = vcmp.eq.s32.totalorder %v212, %v338
      %vm447 = vcmp.eq.s32.totalorder %v212, %v341
      %vm448 = vcmp.eq.s32.totalorder %v212, %v344
      %vm449 = vcmp.eq.s32.totalorder %v212, %v347
      %vm450 = vcmp.eq.s32.totalorder %v212, %v350
      %vm451 = vcmp.eq.s32.totalorder %v212, %v353
      %vm452 = vcmp.eq.s32.totalorder %v212, %v356
      %vm453 = vcmp.eq.s32.totalorder %v212, %v359
      %vm454 = vcmp.eq.s32.totalorder %v212, %v362
      %vm455 = vcmp.eq.s32.totalorder %v212, %v365
      %vm456 = vcmp.eq.s32.totalorder %v212, %v368
      %vm457 = vcmp.eq.s32.totalorder %v212, %v371
      %vm458 = vcmp.eq.s32.totalorder %v212, %v374
      %vm459 = vcmp.eq.s32.totalorder %v212, %v377
      %vm460 = vcmp.eq.s32.totalorder %v212, %v380
      %vm461 = vcmp.eq.s32.totalorder %v212, %v383
      %vm462 = vcmp.eq.s32.totalorder %v212, %v386
      %vm463 = vcmp.eq.s32.totalorder %v212, %v389
      %vm464 = vcmp.eq.s32.totalorder %v212, %v392
      %vm465 = vcmp.eq.s32.totalorder %v212, %v395
      %vm466 = vcmp.eq.s32.totalorder %v212, %v398
      %vm467 = vcmp.eq.s32.totalorder %v212, %v401
      %vm468 = vcmp.eq.s32.totalorder %v212, %v404
      %v469 = vadd.s32 %v147, 5
      %v470 = vadd.s32 %v148, 5
      %v471 = vadd.s32 %v149, 5
      %v472 = vadd.s32 %v150, 5
      %v473 = vadd.s32 %v151, 5
      %v474 = vadd.s32 %v152, 5
      %v475 = vadd.s32 %v153, 5
      %v476 = vadd.s32 %v154, 5
      %v477 = vadd.s32 %v155, 5
      %v478 = vadd.s32 %v156, 5
      %v479 = vadd.s32 %v157, 5
      %v480 = vadd.s32 %v158, 5
      %v481 = vadd.s32 %v159, 5
      %v482 = vadd.s32 %v160, 5
      %v483 = vadd.s32 %v161, 5
      %v484 = vadd.s32 %v162, 5
      %v485 = vadd.s32 %v163, 5
      %v486 = vadd.s32 %v164, 5
      %v487 = vadd.s32 %v165, 5
      %v488 = vadd.s32 %v166, 5
      %v489 = vadd.s32 %v167, 5
      %v490 = vadd.s32 %v168, 5
      %v491 = vadd.s32 %v169, 5
      %v492 = vadd.s32 %v170, 5
      %v493 = vadd.s32 %v171, 5
      %v494 = vadd.s32 %v172, 5
      %v495 = vadd.s32 %v173, 5
      %v496 = vadd.s32 %v174, 5
      %v497 = vadd.s32 %v175, 5
      %v498 = vadd.s32 %v176, 5
      %v499 = vadd.s32 %v177, 5
      %v500 = vadd.s32 %v178, 5
      %v501 = vadd.s32 %v179, 5
      %v502 = vadd.s32 %v180, 5
      %v503 = vadd.s32 %v181, 5
      %v504 = vadd.s32 %v182, 5
      %v505 = vadd.s32 %v183, 5
      %v506 = vadd.s32 %v184, 5
      %v507 = vadd.s32 %v185, 5
      %v508 = vadd.s32 %v186, 5
      %v509 = vadd.s32 %v187, 5
      %v510 = vadd.s32 %v188, 5
      %v511 = vadd.s32 %v189, 5
      %v512 = vadd.s32 %v190, 5
      %v513 = vadd.s32 %v191, 5
      %v514 = vadd.s32 %v192, 5
      %v515 = vadd.s32 %v193, 5
      %v516 = vadd.s32 %v194, 5
      %v517 = vadd.s32 %v195, 5
      %v518 = vadd.s32 %v196, 5
      %v519 = vadd.s32 %v197, 5
      %v520 = vadd.s32 %v198, 5
      %v521 = vadd.s32 %v199, 5
      %v522 = vadd.s32 %v200, 5
      %v523 = vadd.s32 %v201, 5
      %v524 = vadd.s32 %v202, 5
      %v525 = vadd.s32 %v203, 5
      %v526 = vadd.s32 %v204, 5
      %v527 = vadd.s32 %v205, 5
      %v528 = vadd.s32 %v206, 5
      %v529 = vadd.s32 %v207, 5
      %v530 = vadd.s32 %v208, 5
      %v531 = vadd.s32 %v209, 5
      %v532 = vadd.s32 %v210, 5
      %533 = vset.pattern.permute.xlu0 1
      %534 = vperm.xlu0 %533, %v469
      %v535 = vpop.permute.xlu0 %534
      %536 = vset.pattern.permute.xlu0 1
      %537 = vperm.xlu0 %536, %v470
      %v538 = vpop.permute.xlu0 %537
      %539 = vset.pattern.permute.xlu0 1
      %540 = vperm.xlu0 %539, %v471
      %v541 = vpop.permute.xlu0 %540
      %542 = vset.pattern.permute.xlu0 1
      %543 = vperm.xlu0 %542, %v472
      %v544 = vpop.permute.xlu0 %543
      %545 = vset.pattern.permute.xlu0 1
      %546 = vperm.xlu0 %545, %v473
      %v547 = vpop.permute.xlu0 %546
      %548 = vset.pattern.permute.xlu0 1
      %549 = vperm.xlu0 %548, %v474
      %v550 = vpop.permute.xlu0 %549
      %551 = vset.pattern.permute.xlu0 1
      %552 = vperm.xlu0 %551, %v475
      %v553 = vpop.permute.xlu0 %552
      %554 = vset.pattern.permute.xlu0 1
      %555 = vperm.xlu0 %554, %v476
      %v556 = vpop.permute.xlu0 %555
      %557 = vset.pattern.permute.xlu0 1
      %558 = vperm.xlu0 %557, %v477
      %v559 = vpop.permute.xlu0 %558
      %560 = vset.pattern.permute.xlu0 1
      %561 = vperm.xlu0 %560, %v478
      %v562 = vpop.permute.xlu0 %561
      %563 = vset.pattern.permute.xlu0 1
      %564 = vperm.xlu0 %563, %v479
      %v565 = vpop.permute.xlu0 %564
      %566 = vset.pattern.permute.xlu0 1
      %567 = vperm.xlu0 %566, %v480
      %v568 = vpop.permute.xlu0 %567
      %569 = vset.pattern.permute.xlu0 1
      %570 = vperm.xlu0 %569, %v481
      %v571 = vpop.permute.xlu0 %570
      %572 = vset.pattern.permute.xlu0 1
      %573 = vperm.xlu0 %572, %v482
      %v574 = vpop.permute.xlu0 %573
      %575 = vset.pattern.permute.xlu0 1
      %576 = vperm.xlu0 %575, %v483
      %v577 = vpop.permute.xlu0 %576
      %578 = vset.pattern.permute.xlu0 1
      %579 = vperm.xlu0 %578, %v484
      %v580 = vpop.permute.xlu0 %579
      %581 = vset.pattern.permute.xlu0 1
      %582 = vperm.xlu0 %581, %v485
      %v583 = vpop.permute.xlu0 %582
      %584 = vset.pattern.permute.xlu0 1
      %585 = vperm.xlu0 %584, %v486
      %v586 = vpop.permute.xlu0 %585
      %587 = vset.pattern.permute.xlu0 1
      %588 = vperm.xlu0 %587, %v487
      %v589 = vpop.permute.xlu0 %588
      %590 = vset.pattern.permute.xlu0 1
      %591 = vperm.xlu0 %590, %v488
      %v592 = vpop.permute.xlu0 %591
      %593 = vset.pattern.permute.xlu0 1
      %594 = vperm.xlu0 %593, %v489
      %v595 = vpop.permute.xlu0 %594
      %596 = vset.pattern.permute.xlu0 1
      %597 = vperm.xlu0 %596, %v490
      %v598 = vpop.permute.xlu0 %597
      %599 = vset.pattern.permute.xlu0 1
      %600 = vperm.xlu0 %599, %v491
      %v601 = vpop.permute.xlu0 %600
      %602 = vset.pattern.permute.xlu0 1
      %603 = vperm.xlu0 %602, %v492
      %v604 = vpop.permute.xlu0 %603
      %605 = vset.pattern.permute.xlu0 1
      %606 = vperm.xlu0 %605, %v493
      %v607 = vpop.permute.xlu0 %606
      %608 = vset.pattern.permute.xlu0 1
      %609 = vperm.xlu0 %608, %v494
      %v610 = vpop.permute.xlu0 %609
      %611 = vset.pattern.permute.xlu0 1
      %612 = vperm.xlu0 %611, %v495
      %v613 = vpop.permute.xlu0 %612
      %614 = vset.pattern.permute.xlu0 1
      %615 = vperm.xlu0 %614, %v496
      %v616 = vpop.permute.xlu0 %615
      %617 = vset.pattern.permute.xlu0 1
      %618 = vperm.xlu0 %617, %v497
      %v619 = vpop.permute.xlu0 %618
      %620 = vset.pattern.permute.xlu0 1
      %621 = vperm.xlu0 %620, %v498
      %v622 = vpop.permute.xlu0 %621
      %623 = vset.pattern.permute.xlu0 1
      %624 = vperm.xlu0 %623, %v499
      %v625 = vpop.permute.xlu0 %624
      %626 = vset.pattern.permute.xlu0 1
      %627 = vperm.xlu0 %626, %v500
      %v628 = vpop.permute.xlu0 %627
      %629 = vset.pattern.permute.xlu0 1
      %630 = vperm.xlu0 %629, %v501
      %v631 = vpop.permute.xlu0 %630
      %632 = vset.pattern.permute.xlu0 1
      %633 = vperm.xlu0 %632, %v502
      %v634 = vpop.permute.xlu0 %633
      %635 = vset.pattern.permute.xlu0 1
      %636 = vperm.xlu0 %635, %v503
      %v637 = vpop.permute.xlu0 %636
      %638 = vset.pattern.permute.xlu0 1
      %639 = vperm.xlu0 %638, %v504
      %v640 = vpop.permute.xlu0 %639
      %641 = vset.pattern.permute.xlu0 1
      %642 = vperm.xlu0 %641, %v505
      %v643 = vpop.permute.xlu0 %642
      %644 = vset.pattern.permute.xlu0 1
      %645 = vperm.xlu0 %644, %v506
      %v646 = vpop.permute.xlu0 %645
      %647 = vset.pattern.permute.xlu0 1
      %648 = vperm.xlu0 %647, %v507
      %v649 = vpop.permute.xlu0 %648
      %650 = vset.pattern.permute.xlu0 1
      %651 = vperm.xlu0 %650, %v508
      %v652 = vpop.permute.xlu0 %651
      %653 = vset.pattern.permute.xlu0 1
      %654 = vperm.xlu0 %653, %v509
      %v655 = vpop.permute.xlu0 %654
      %656 = vset.pattern.permute.xlu0 1
      %657 = vperm.xlu0 %656, %v510
      %v658 = vpop.permute.xlu0 %657
      %659 = vset.pattern.permute.xlu0 1
      %660 = vperm.xlu0 %659, %v511
      %v661 = vpop.permute.xlu0 %660
      %662 = vset.pattern.permute.xlu0 1
      %663 = vperm.xlu0 %662, %v512
      %v664 = vpop.permute.xlu0 %663
      %665 = vset.pattern.permute.xlu0 1
      %666 = vperm.xlu0 %665, %v513
      %v667 = vpop.permute.xlu0 %666
      %668 = vset.pattern.permute.xlu0 1
      %669 = vperm.xlu0 %668, %v514
      %v670 = vpop.permute.xlu0 %669
      %671 = vset.pattern.permute.xlu0 1
      %672 = vperm.xlu0 %671, %v515
      %v673 = vpop.permute.xlu0 %672
      %674 = vset.pattern.permute.xlu0 1
      %675 = vperm.xlu0 %674, %v516
      %v676 = vpop.permute.xlu0 %675
      %677 = vset.pattern.permute.xlu0 1
      %678 = vperm.xlu0 %677, %v517
      %v679 = vpop.permute.xlu0 %678
      %680 = vset.pattern.permute.xlu0 1
      %681 = vperm.xlu0 %680, %v518
      %v682 = vpop.permute.xlu0 %681
      %683 = vset.pattern.permute.xlu0 1
      %684 = vperm.xlu0 %683, %v519
      %v685 = vpop.permute.xlu0 %684
      %686 = vset.pattern.permute.xlu0 1
      %687 = vperm.xlu0 %686, %v520
      %v688 = vpop.permute.xlu0 %687
      %689 = vset.pattern.permute.xlu0 1
      %690 = vperm.xlu0 %689, %v521
      %v691 = vpop.permute.xlu0 %690
      %692 = vset.pattern.permute.xlu0 1
      %693 = vperm.xlu0 %692, %v522
      %v694 = vpop.permute.xlu0 %693
      %695 = vset.pattern.permute.xlu0 1
      %696 = vperm.xlu0 %695, %v523
      %v697 = vpop.permute.xlu0 %696
      %698 = vset.pattern.permute.xlu0 1
      %699 = vperm.xlu0 %698, %v524
      %v700 = vpop.permute.xlu0 %699
      %701 = vset.pattern.permute.xlu0 1
      %702 = vperm.xlu0 %701, %v525
      %v703 = vpop.permute.xlu0 %702
      %704 = vset.pattern.permute.xlu0 1
      %705 = vperm.xlu0 %704, %v526
      %v706 = vpop.permute.xlu0 %705
      %707 = vset.pattern.permute.xlu0 1
      %708 = vperm.xlu0 %707, %v527
      %v709 = vpop.permute.xlu0 %708
      %710 = vset.pattern.permute.xlu0 1
      %711 = vperm.xlu0 %710, %v528
      %v712 = vpop.permute.xlu0 %711
      %713 = vset.pattern.permute.xlu0 1
      %714 = vperm.xlu0 %713, %v529
      %v715 = vpop.permute.xlu0 %714
      %716 = vset.pattern.permute.xlu0 1
      %717 = vperm.xlu0 %716, %v530
      %v718 = vpop.permute.xlu0 %717
      %719 = vset.pattern.permute.xlu0 1
      %720 = vperm.xlu0 %719, %v531
      %v721 = vpop.permute.xlu0 %720
      %722 = vset.pattern.permute.xlu0 1
      %723 = vperm.xlu0 %722, %v532
      %v724 = vpop.permute.xlu0 %723
      %vm725 = vcmp.eq.s32.totalorder %v212, %v535
      %vm726 = vcmp.eq.s32.totalorder %v212, %v538
      %vm727 = vcmp.eq.s32.totalorder %v212, %v541
      %vm728 = vcmp.eq.s32.totalorder %v212, %v544
      %vm729 = vcmp.eq.s32.totalorder %v212, %v547
      %vm730 = vcmp.eq.s32.totalorder %v212, %v550
      %vm731 = vcmp.eq.s32.totalorder %v212, %v553
      %vm732 = vcmp.eq.s32.totalorder %v212, %v556
      %vm733 = vcmp.eq.s32.totalorder %v212, %v559
      %vm734 = vcmp.eq.s32.totalorder %v212, %v562
      %vm735 = vcmp.eq.s32.totalorder %v212, %v565
      %vm736 = vcmp.eq.s32.totalorder %v212, %v568
      %vm737 = vcmp.eq.s32.totalorder %v212, %v571
      %vm738 = vcmp.eq.s32.totalorder %v212, %v574
      %vm739 = vcmp.eq.s32.totalorder %v212, %v577
      %vm740 = vcmp.eq.s32.totalorder %v212, %v580
      %vm741 = vcmp.eq.s32.totalorder %v212, %v583
      %vm742 = vcmp.eq.s32.totalorder %v212, %v586
      %vm743 = vcmp.eq.s32.totalorder %v212, %v589
      %vm744 = vcmp.eq.s32.totalorder %v212, %v592
      %vm745 = vcmp.eq.s32.totalorder %v212, %v595
      %vm746 = vcmp.eq.s32.totalorder %v212, %v598
      %vm747 = vcmp.eq.s32.totalorder %v212, %v601
      %vm748 = vcmp.eq.s32.totalorder %v212, %v604
      %vm749 = vcmp.eq.s32.totalorder %v212, %v607
      %vm750 = vcmp.eq.s32.totalorder %v212, %v610
      %vm751 = vcmp.eq.s32.totalorder %v212, %v613
      %vm752 = vcmp.eq.s32.totalorder %v212, %v616
      %vm753 = vcmp.eq.s32.totalorder %v212, %v619
      %vm754 = vcmp.eq.s32.totalorder %v212, %v622
      %vm755 = vcmp.eq.s32.totalorder %v212, %v625
      %vm756 = vcmp.eq.s32.totalorder %v212, %v628
      %vm757 = vcmp.eq.s32.totalorder %v212, %v631
      %vm758 = vcmp.eq.s32.totalorder %v212, %v634
      %vm759 = vcmp.eq.s32.totalorder %v212, %v637
      %vm760 = vcmp.eq.s32.totalorder %v212, %v640
      %vm761 = vcmp.eq.s32.totalorder %v212, %v643
      %vm762 = vcmp.eq.s32.totalorder %v212, %v646
      %vm763 = vcmp.eq.s32.totalorder %v212, %v649
      %vm764 = vcmp.eq.s32.totalorder %v212, %v652
      %vm765 = vcmp.eq.s32.totalorder %v212, %v655
      %vm766 = vcmp.eq.s32.totalorder %v212, %v658
      %vm767 = vcmp.eq.s32.totalorder %v212, %v661
      %vm768 = vcmp.eq.s32.totalorder %v212, %v664
      %vm769 = vcmp.eq.s32.totalorder %v212, %v667
      %vm770 = vcmp.eq.s32.totalorder %v212, %v670
      %vm771 = vcmp.eq.s32.totalorder %v212, %v673
      %vm772 = vcmp.eq.s32.totalorder %v212, %v676
      %vm773 = vcmp.eq.s32.totalorder %v212, %v679
      %vm774 = vcmp.eq.s32.totalorder %v212, %v682
      %vm775 = vcmp.eq.s32.totalorder %v212, %v685
      %vm776 = vcmp.eq.s32.totalorder %v212, %v688
      %vm777 = vcmp.eq.s32.totalorder %v212, %v691
      %vm778 = vcmp.eq.s32.totalorder %v212, %v694
      %vm779 = vcmp.eq.s32.totalorder %v212, %v697
      %vm780 = vcmp.eq.s32.totalorder %v212, %v700
      %vm781 = vcmp.eq.s32.totalorder %v212, %v703
      %vm782 = vcmp.eq.s32.totalorder %v212, %v706
      %vm783 = vcmp.eq.s32.totalorder %v212, %v709
      %vm784 = vcmp.eq.s32.totalorder %v212, %v712
      %vm785 = vcmp.eq.s32.totalorder %v212, %v715
      %vm786 = vcmp.eq.s32.totalorder %v212, %v718
      %vm787 = vcmp.eq.s32.totalorder %v212, %v721
      %vm788 = vcmp.eq.s32.totalorder %v212, %v724
      %vm789 = vmor %vm405, %vm725
      %vm790 = vmor %vm406, %vm726
      %vm791 = vmor %vm407, %vm727
      %vm792 = vmor %vm408, %vm728
      %vm793 = vmor %vm409, %vm729
      %vm794 = vmor %vm410, %vm730
      %vm795 = vmor %vm411, %vm731
      %vm796 = vmor %vm412, %vm732
      %vm797 = vmor %vm413, %vm733
      %vm798 = vmor %vm414, %vm734
      %vm799 = vmor %vm415, %vm735
      %vm800 = vmor %vm416, %vm736
      %vm801 = vmor %vm417, %vm737
      %vm802 = vmor %vm418, %vm738
      %vm803 = vmor %vm419, %vm739
      %vm804 = vmor %vm420, %vm740
      %vm805 = vmor %vm421, %vm741
      %vm806 = vmor %vm422, %vm742
      %vm807 = vmor %vm423, %vm743
      %vm808 = vmor %vm424, %vm744
      %vm809 = vmor %vm425, %vm745
      %vm810 = vmor %vm426, %vm746
      %vm811 = vmor %vm427, %vm747
      %vm812 = vmor %vm428, %vm748
      %vm813 = vmor %vm429, %vm749
      %vm814 = vmor %vm430, %vm750
      %vm815 = vmor %vm431, %vm751
      %vm816 = vmor %vm432, %vm752
      %vm817 = vmor %vm433, %vm753
      %vm818 = vmor %vm434, %vm754
      %vm819 = vmor %vm435, %vm755
      %vm820 = vmor %vm436, %vm756
      %vm821 = vmor %vm437, %vm757
      %vm822 = vmor %vm438, %vm758
      %vm823 = vmor %vm439, %vm759
      %vm824 = vmor %vm440, %vm760
      %vm825 = vmor %vm441, %vm761
      %vm826 = vmor %vm442, %vm762
      %vm827 = vmor %vm443, %vm763
      %vm828 = vmor %vm444, %vm764
      %vm829 = vmor %vm445, %vm765
      %vm830 = vmor %vm446, %vm766
      %vm831 = vmor %vm447, %vm767
      %vm832 = vmor %vm448, %vm768
      %vm833 = vmor %vm449, %vm769
      %vm834 = vmor %vm450, %vm770
      %vm835 = vmor %vm451, %vm771
      %vm836 = vmor %vm452, %vm772
      %vm837 = vmor %vm453, %vm773
      %vm838 = vmor %vm454, %vm774
      %vm839 = vmor %vm455, %vm775
      %vm840 = vmor %vm456, %vm776
      %vm841 = vmor %vm457, %vm777
      %vm842 = vmor %vm458, %vm778
      %vm843 = vmor %vm459, %vm779
      %vm844 = vmor %vm460, %vm780
      %vm845 = vmor %vm461, %vm781
      %vm846 = vmor %vm462, %vm782
      %vm847 = vmor %vm463, %vm783
      %vm848 = vmor %vm464, %vm784
      %vm849 = vmor %vm465, %vm785
      %vm850 = vmor %vm466, %vm786
      %vm851 = vmor %vm467, %vm787
      %vm852 = vmor %vm468, %vm788
      %v853 = vadd.s32 %v147, 11
      %v854 = vadd.s32 %v148, 11
      %v855 = vadd.s32 %v149, 11
      %v856 = vadd.s32 %v150, 11
      %v857 = vadd.s32 %v151, 11
      %v858 = vadd.s32 %v152, 11
      %v859 = vadd.s32 %v153, 11
      %v860 = vadd.s32 %v154, 11
      %v861 = vadd.s32 %v155, 11
      %v862 = vadd.s32 %v156, 11
      %v863 = vadd.s32 %v157, 11
      %v864 = vadd.s32 %v158, 11
      %v865 = vadd.s32 %v159, 11
      %v866 = vadd.s32 %v160, 11
      %v867 = vadd.s32 %v161, 11
      %v868 = vadd.s32 %v162, 11
      %v869 = vadd.s32 %v163, 11
      %v870 = vadd.s32 %v164, 11
      %v871 = vadd.s32 %v165, 11
      %v872 = vadd.s32 %v166, 11
      %v873 = vadd.s32 %v167, 11
      %v874 = vadd.s32 %v168, 11
      %v875 = vadd.s32 %v169, 11
      %v876 = vadd.s32 %v170, 11
      %v877 = vadd.s32 %v171, 11
      %v878 = vadd.s32 %v172, 11
      %v879 = vadd.s32 %v173, 11
      %v880 = vadd.s32 %v174, 11
      %v881 = vadd.s32 %v175, 11
      %v882 = vadd.s32 %v176, 11
      %v883 = vadd.s32 %v177, 11
      %v884 = vadd.s32 %v178, 11
      %v885 = vadd.s32 %v179, 11
      %v886 = vadd.s32 %v180, 11
      %v887 = vadd.s32 %v181, 11
      %v888 = vadd.s32 %v182, 11
      %v889 = vadd.s32 %v183, 11
      %v890 = vadd.s32 %v184, 11
      %v891 = vadd.s32 %v185, 11
      %v892 = vadd.s32 %v186, 11
      %v893 = vadd.s32 %v187, 11
      %v894 = vadd.s32 %v188, 11
      %v895 = vadd.s32 %v189, 11
      %v896 = vadd.s32 %v190, 11
      %v897 = vadd.s32 %v191, 11
      %v898 = vadd.s32 %v192, 11
      %v899 = vadd.s32 %v193, 11
      %v900 = vadd.s32 %v194, 11
      %v901 = vadd.s32 %v195, 11
      %v902 = vadd.s32 %v196, 11
      %v903 = vadd.s32 %v197, 11
      %v904 = vadd.s32 %v198, 11
      %v905 = vadd.s32 %v199, 11
      %v906 = vadd.s32 %v200, 11
      %v907 = vadd.s32 %v201, 11
      %v908 = vadd.s32 %v202, 11
      %v909 = vadd.s32 %v203, 11
      %v910 = vadd.s32 %v204, 11
      %v911 = vadd.s32 %v205, 11
      %v912 = vadd.s32 %v206, 11
      %v913 = vadd.s32 %v207, 11
      %v914 = vadd.s32 %v208, 11
      %v915 = vadd.s32 %v209, 11
      %v916 = vadd.s32 %v210, 11
      %917 = vset.pattern.permute.xlu0 2
      %918 = vperm.xlu0 %917, %v853
      %v919 = vpop.permute.xlu0 %918
      %920 = vset.pattern.permute.xlu0 2
      %921 = vperm.xlu0 %920, %v854
      %v922 = vpop.permute.xlu0 %921
      %923 = vset.pattern.permute.xlu0 2
      %924 = vperm.xlu0 %923, %v855
      %v925 = vpop.permute.xlu0 %924
      %926 = vset.pattern.permute.xlu0 2
      %927 = vperm.xlu0 %926, %v856
      %v928 = vpop.permute.xlu0 %927
      %929 = vset.pattern.permute.xlu0 2
      %930 = vperm.xlu0 %929, %v857
      %v931 = vpop.permute.xlu0 %930
      %932 = vset.pattern.permute.xlu0 2
      %933 = vperm.xlu0 %932, %v858
      %v934 = vpop.permute.xlu0 %933
      %935 = vset.pattern.permute.xlu0 2
      %936 = vperm.xlu0 %935, %v859
      %v937 = vpop.permute.xlu0 %936
      %938 = vset.pattern.permute.xlu0 2
      %939 = vperm.xlu0 %938, %v860
      %v940 = vpop.permute.xlu0 %939
      %941 = vset.pattern.permute.xlu0 2
      %942 = vperm.xlu0 %941, %v861
      %v943 = vpop.permute.xlu0 %942
      %944 = vset.pattern.permute.xlu0 2
      %945 = vperm.xlu0 %944, %v862
      %v946 = vpop.permute.xlu0 %945
      %947 = vset.pattern.permute.xlu0 2
      %948 = vperm.xlu0 %947, %v863
      %v949 = vpop.permute.xlu0 %948
      %950 = vset.pattern.permute.xlu0 2
      %951 = vperm.xlu0 %950, %v864
      %v952 = vpop.permute.xlu0 %951
      %953 = vset.pattern.permute.xlu0 2
      %954 = vperm.xlu0 %953, %v865
      %v955 = vpop.permute.xlu0 %954
      %956 = vset.pattern.permute.xlu0 2
      %957 = vperm.xlu0 %956, %v866
      %v958 = vpop.permute.xlu0 %957
      %959 = vset.pattern.permute.xlu0 2
      %960 = vperm.xlu0 %959, %v867
      %v961 = vpop.permute.xlu0 %960
      %962 = vset.pattern.permute.xlu0 2
      %963 = vperm.xlu0 %962, %v868
      %v964 = vpop.permute.xlu0 %963
      %965 = vset.pattern.permute.xlu0 2
      %966 = vperm.xlu0 %965, %v869
      %v967 = vpop.permute.xlu0 %966
      %968 = vset.pattern.permute.xlu0 2
      %969 = vperm.xlu0 %968, %v870
      %v970 = vpop.permute.xlu0 %969
      %971 = vset.pattern.permute.xlu0 2
      %972 = vperm.xlu0 %971, %v871
      %v973 = vpop.permute.xlu0 %972
      %974 = vset.pattern.permute.xlu0 2
      %975 = vperm.xlu0 %974, %v872
      %v976 = vpop.permute.xlu0 %975
      %977 = vset.pattern.permute.xlu0 2
      %978 = vperm.xlu0 %977, %v873
      %v979 = vpop.permute.xlu0 %978
      %980 = vset.pattern.permute.xlu0 2
      %981 = vperm.xlu0 %980, %v874
      %v982 = vpop.permute.xlu0 %981
      %983 = vset.pattern.permute.xlu0 2
      %984 = vperm.xlu0 %983, %v875
      %v985 = vpop.permute.xlu0 %984
      %986 = vset.pattern.permute.xlu0 2
      %987 = vperm.xlu0 %986, %v876
      %v988 = vpop.permute.xlu0 %987
      %989 = vset.pattern.permute.xlu0 2
      %990 = vperm.xlu0 %989, %v877
      %v991 = vpop.permute.xlu0 %990
      %992 = vset.pattern.permute.xlu0 2
      %993 = vperm.xlu0 %992, %v878
      %v994 = vpop.permute.xlu0 %993
      %995 = vset.pattern.permute.xlu0 2
      %996 = vperm.xlu0 %995, %v879
      %v997 = vpop.permute.xlu0 %996
      %998 = vset.pattern.permute.xlu0 2
      %999 = vperm.xlu0 %998, %v880
      %v1000 = vpop.permute.xlu0 %999
      %1001 = vset.pattern.permute.xlu0 2
      %1002 = vperm.xlu0 %1001, %v881
      %v1003 = vpop.permute.xlu0 %1002
      %1004 = vset.pattern.permute.xlu0 2
      %1005 = vperm.xlu0 %1004, %v882
      %v1006 = vpop.permute.xlu0 %1005
      %1007 = vset.pattern.permute.xlu0 2
      %1008 = vperm.xlu0 %1007, %v883
      %v1009 = vpop.permute.xlu0 %1008
      %1010 = vset.pattern.permute.xlu0 2
      %1011 = vperm.xlu0 %1010, %v884
      %v1012 = vpop.permute.xlu0 %1011
      %1013 = vset.pattern.permute.xlu0 2
      %1014 = vperm.xlu0 %1013, %v885
      %v1015 = vpop.permute.xlu0 %1014
      %1016 = vset.pattern.permute.xlu0 2
      %1017 = vperm.xlu0 %1016, %v886
      %v1018 = vpop.permute.xlu0 %1017
      %1019 = vset.pattern.permute.xlu0 2
      %1020 = vperm.xlu0 %1019, %v887
      %v1021 = vpop.permute.xlu0 %1020
      %1022 = vset.pattern.permute.xlu0 2
      %1023 = vperm.xlu0 %1022, %v888
      %v1024 = vpop.permute.xlu0 %1023
      %1025 = vset.pattern.permute.xlu0 2
      %1026 = vperm.xlu0 %1025, %v889
      %v1027 = vpop.permute.xlu0 %1026
      %1028 = vset.pattern.permute.xlu0 2
      %1029 = vperm.xlu0 %1028, %v890
      %v1030 = vpop.permute.xlu0 %1029
      %1031 = vset.pattern.permute.xlu0 2
      %1032 = vperm.xlu0 %1031, %v891
      %v1033 = vpop.permute.xlu0 %1032
      %1034 = vset.pattern.permute.xlu0 2
      %1035 = vperm.xlu0 %1034, %v892
      %v1036 = vpop.permute.xlu0 %1035
      %1037 = vset.pattern.permute.xlu0 2
      %1038 = vperm.xlu0 %1037, %v893
      %v1039 = vpop.permute.xlu0 %1038
      %1040 = vset.pattern.permute.xlu0 2
      %1041 = vperm.xlu0 %1040, %v894
      %v1042 = vpop.permute.xlu0 %1041
      %1043 = vset.pattern.permute.xlu0 2
      %1044 = vperm.xlu0 %1043, %v895
      %v1045 = vpop.permute.xlu0 %1044
      %1046 = vset.pattern.permute.xlu0 2
      %1047 = vperm.xlu0 %1046, %v896
      %v1048 = vpop.permute.xlu0 %1047
      %1049 = vset.pattern.permute.xlu0 2
      %1050 = vperm.xlu0 %1049, %v897
      %v1051 = vpop.permute.xlu0 %1050
      %1052 = vset.pattern.permute.xlu0 2
      %1053 = vperm.xlu0 %1052, %v898
      %v1054 = vpop.permute.xlu0 %1053
      %1055 = vset.pattern.permute.xlu0 2
      %1056 = vperm.xlu0 %1055, %v899
      %v1057 = vpop.permute.xlu0 %1056
      %1058 = vset.pattern.permute.xlu0 2
      %1059 = vperm.xlu0 %1058, %v900
      %v1060 = vpop.permute.xlu0 %1059
      %1061 = vset.pattern.permute.xlu0 2
      %1062 = vperm.xlu0 %1061, %v901
      %v1063 = vpop.permute.xlu0 %1062
      %1064 = vset.pattern.permute.xlu0 2
      %1065 = vperm.xlu0 %1064, %v902
      %v1066 = vpop.permute.xlu0 %1065
      %1067 = vset.pattern.permute.xlu0 2
      %1068 = vperm.xlu0 %1067, %v903
      %v1069 = vpop.permute.xlu0 %1068
      %1070 = vset.pattern.permute.xlu0 2
      %1071 = vperm.xlu0 %1070, %v904
      %v1072 = vpop.permute.xlu0 %1071
      %1073 = vset.pattern.permute.xlu0 2
      %1074 = vperm.xlu0 %1073, %v905
      %v1075 = vpop.permute.xlu0 %1074
      %1076 = vset.pattern.permute.xlu0 2
      %1077 = vperm.xlu0 %1076, %v906
      %v1078 = vpop.permute.xlu0 %1077
      %1079 = vset.pattern.permute.xlu0 2
      %1080 = vperm.xlu0 %1079, %v907
      %v1081 = vpop.permute.xlu0 %1080
      %1082 = vset.pattern.permute.xlu0 2
      %1083 = vperm.xlu0 %1082, %v908
      %v1084 = vpop.permute.xlu0 %1083
      %1085 = vset.pattern.permute.xlu0 2
      %1086 = vperm.xlu0 %1085, %v909
      %v1087 = vpop.permute.xlu0 %1086
      %1088 = vset.pattern.permute.xlu0 2
      %1089 = vperm.xlu0 %1088, %v910
      %v1090 = vpop.permute.xlu0 %1089
      %1091 = vset.pattern.permute.xlu0 2
      %1092 = vperm.xlu0 %1091, %v911
      %v1093 = vpop.permute.xlu0 %1092
      %1094 = vset.pattern.permute.xlu0 2
      %1095 = vperm.xlu0 %1094, %v912
      %v1096 = vpop.permute.xlu0 %1095
      %1097 = vset.pattern.permute.xlu0 2
      %1098 = vperm.xlu0 %1097, %v913
      %v1099 = vpop.permute.xlu0 %1098
      %1100 = vset.pattern.permute.xlu0 2
      %1101 = vperm.xlu0 %1100, %v914
      %v1102 = vpop.permute.xlu0 %1101
      %1103 = vset.pattern.permute.xlu0 2
      %1104 = vperm.xlu0 %1103, %v915
      %v1105 = vpop.permute.xlu0 %1104
      %1106 = vset.pattern.permute.xlu0 2
      %1107 = vperm.xlu0 %1106, %v916
      %v1108 = vpop.permute.xlu0 %1107
      %vm1109 = vcmp.eq.s32.totalorder %v212, %v919
      %vm1110 = vcmp.eq.s32.totalorder %v212, %v922
      %vm1111 = vcmp.eq.s32.totalorder %v212, %v925
      %vm1112 = vcmp.eq.s32.totalorder %v212, %v928
      %vm1113 = vcmp.eq.s32.totalorder %v212, %v931
      %vm1114 = vcmp.eq.s32.totalorder %v212, %v934
      %vm1115 = vcmp.eq.s32.totalorder %v212, %v937
      %vm1116 = vcmp.eq.s32.totalorder %v212, %v940
      %vm1117 = vcmp.eq.s32.totalorder %v212, %v943
      %vm1118 = vcmp.eq.s32.totalorder %v212, %v946
      %vm1119 = vcmp.eq.s32.totalorder %v212, %v949
      %vm1120 = vcmp.eq.s32.totalorder %v212, %v952
      %vm1121 = vcmp.eq.s32.totalorder %v212, %v955
      %vm1122 = vcmp.eq.s32.totalorder %v212, %v958
      %vm1123 = vcmp.eq.s32.totalorder %v212, %v961
      %vm1124 = vcmp.eq.s32.totalorder %v212, %v964
      %vm1125 = vcmp.eq.s32.totalorder %v212, %v967
      %vm1126 = vcmp.eq.s32.totalorder %v212, %v970
      %vm1127 = vcmp.eq.s32.totalorder %v212, %v973
      %vm1128 = vcmp.eq.s32.totalorder %v212, %v976
      %vm1129 = vcmp.eq.s32.totalorder %v212, %v979
      %vm1130 = vcmp.eq.s32.totalorder %v212, %v982
      %vm1131 = vcmp.eq.s32.totalorder %v212, %v985
      %vm1132 = vcmp.eq.s32.totalorder %v212, %v988
      %vm1133 = vcmp.eq.s32.totalorder %v212, %v991
      %vm1134 = vcmp.eq.s32.totalorder %v212, %v994
      %vm1135 = vcmp.eq.s32.totalorder %v212, %v997
      %vm1136 = vcmp.eq.s32.totalorder %v212, %v1000
      %vm1137 = vcmp.eq.s32.totalorder %v212, %v1003
      %vm1138 = vcmp.eq.s32.totalorder %v212, %v1006
      %vm1139 = vcmp.eq.s32.totalorder %v212, %v1009
      %vm1140 = vcmp.eq.s32.totalorder %v212, %v1012
      %vm1141 = vcmp.eq.s32.totalorder %v212, %v1015
      %vm1142 = vcmp.eq.s32.totalorder %v212, %v1018
      %vm1143 = vcmp.eq.s32.totalorder %v212, %v1021
      %vm1144 = vcmp.eq.s32.totalorder %v212, %v1024
      %vm1145 = vcmp.eq.s32.totalorder %v212, %v1027
      %vm1146 = vcmp.eq.s32.totalorder %v212, %v1030
      %vm1147 = vcmp.eq.s32.totalorder %v212, %v1033
      %vm1148 = vcmp.eq.s32.totalorder %v212, %v1036
      %vm1149 = vcmp.eq.s32.totalorder %v212, %v1039
      %vm1150 = vcmp.eq.s32.totalorder %v212, %v1042
      %vm1151 = vcmp.eq.s32.totalorder %v212, %v1045
      %vm1152 = vcmp.eq.s32.totalorder %v212, %v1048
      %vm1153 = vcmp.eq.s32.totalorder %v212, %v1051
      %vm1154 = vcmp.eq.s32.totalorder %v212, %v1054
      %vm1155 = vcmp.eq.s32.totalorder %v212, %v1057
      %vm1156 = vcmp.eq.s32.totalorder %v212, %v1060
      %vm1157 = vcmp.eq.s32.totalorder %v212, %v1063
      %vm1158 = vcmp.eq.s32.totalorder %v212, %v1066
      %vm1159 = vcmp.eq.s32.totalorder %v212, %v1069
      %vm1160 = vcmp.eq.s32.totalorder %v212, %v1072
      %vm1161 = vcmp.eq.s32.totalorder %v212, %v1075
      %vm1162 = vcmp.eq.s32.totalorder %v212, %v1078
      %vm1163 = vcmp.eq.s32.totalorder %v212, %v1081
      %vm1164 = vcmp.eq.s32.totalorder %v212, %v1084
      %vm1165 = vcmp.eq.s32.totalorder %v212, %v1087
      %vm1166 = vcmp.eq.s32.totalorder %v212, %v1090
      %vm1167 = vcmp.eq.s32.totalorder %v212, %v1093
      %vm1168 = vcmp.eq.s32.totalorder %v212, %v1096
      %vm1169 = vcmp.eq.s32.totalorder %v212, %v1099
      %vm1170 = vcmp.eq.s32.totalorder %v212, %v1102
      %vm1171 = vcmp.eq.s32.totalorder %v212, %v1105
      %vm1172 = vcmp.eq.s32.totalorder %v212, %v1108
      %vm1173 = vmor %vm789, %vm1109
      %vm1174 = vmor %vm790, %vm1110
      %vm1175 = vmor %vm791, %vm1111
      %vm1176 = vmor %vm792, %vm1112
      %vm1177 = vmor %vm793, %vm1113
      %vm1178 = vmor %vm794, %vm1114
      %vm1179 = vmor %vm795, %vm1115
      %vm1180 = vmor %vm796, %vm1116
      %vm1181 = vmor %vm797, %vm1117
      %vm1182 = vmor %vm798, %vm1118
      %vm1183 = vmor %vm799, %vm1119
      %vm1184 = vmor %vm800, %vm1120
      %vm1185 = vmor %vm801, %vm1121
      %vm1186 = vmor %vm802, %vm1122
      %vm1187 = vmor %vm803, %vm1123
      %vm1188 = vmor %vm804, %vm1124
      %vm1189 = vmor %vm805, %vm1125
      %vm1190 = vmor %vm806, %vm1126
      %vm1191 = vmor %vm807, %vm1127
      %vm1192 = vmor %vm808, %vm1128
      %vm1193 = vmor %vm809, %vm1129
      %vm1194 = vmor %vm810, %vm1130
      %vm1195 = vmor %vm811, %vm1131
      %vm1196 = vmor %vm812, %vm1132
      %vm1197 = vmor %vm813, %vm1133
      %vm1198 = vmor %vm814, %vm1134
      %vm1199 = vmor %vm815, %vm1135
      %vm1200 = vmor %vm816, %vm1136
      %vm1201 = vmor %vm817, %vm1137
      %vm1202 = vmor %vm818, %vm1138
      %vm1203 = vmor %vm819, %vm1139
      %vm1204 = vmor %vm820, %vm1140
      %vm1205 = vmor %vm821, %vm1141
      %vm1206 = vmor %vm822, %vm1142
      %vm1207 = vmor %vm823, %vm1143
      %vm1208 = vmor %vm824, %vm1144
      %vm1209 = vmor %vm825, %vm1145
      %vm1210 = vmor %vm826, %vm1146
      %vm1211 = vmor %vm827, %vm1147
      %vm1212 = vmor %vm828, %vm1148
      %vm1213 = vmor %vm829, %vm1149
      %vm1214 = vmor %vm830, %vm1150
      %vm1215 = vmor %vm831, %vm1151
      %vm1216 = vmor %vm832, %vm1152
      %vm1217 = vmor %vm833, %vm1153
      %vm1218 = vmor %vm834, %vm1154
      %vm1219 = vmor %vm835, %vm1155
      %vm1220 = vmor %vm836, %vm1156
      %vm1221 = vmor %vm837, %vm1157
      %vm1222 = vmor %vm838, %vm1158
      %vm1223 = vmor %vm839, %vm1159
      %vm1224 = vmor %vm840, %vm1160
      %vm1225 = vmor %vm841, %vm1161
      %vm1226 = vmor %vm842, %vm1162
      %vm1227 = vmor %vm843, %vm1163
      %vm1228 = vmor %vm844, %vm1164
      %vm1229 = vmor %vm845, %vm1165
      %vm1230 = vmor %vm846, %vm1166
      %vm1231 = vmor %vm847, %vm1167
      %vm1232 = vmor %vm848, %vm1168
      %vm1233 = vmor %vm849, %vm1169
      %vm1234 = vmor %vm850, %vm1170
      %vm1235 = vmor %vm851, %vm1171
      %vm1236 = vmor %vm852, %vm1172
      %v1237 = vsel %vm1173, 1, 0
      %v1238 = vsel %vm1174, 1, 0
      %v1239 = vsel %vm1175, 1, 0
      %v1240 = vsel %vm1176, 1, 0
      %v1241 = vsel %vm1177, 1, 0
      %v1242 = vsel %vm1178, 1, 0
      %v1243 = vsel %vm1179, 1, 0
      %v1244 = vsel %vm1180, 1, 0
      %v1245 = vsel %vm1181, 1, 0
      %v1246 = vsel %vm1182, 1, 0
      %v1247 = vsel %vm1183, 1, 0
      %v1248 = vsel %vm1184, 1, 0
      %v1249 = vsel %vm1185, 1, 0
      %v1250 = vsel %vm1186, 1, 0
      %v1251 = vsel %vm1187, 1, 0
      %v1252 = vsel %vm1188, 1, 0
      %v1253 = vsel %vm1189, 1, 0
      %v1254 = vsel %vm1190, 1, 0
      %v1255 = vsel %vm1191, 1, 0
      %v1256 = vsel %vm1192, 1, 0
      %v1257 = vsel %vm1193, 1, 0
      %v1258 = vsel %vm1194, 1, 0
      %v1259 = vsel %vm1195, 1, 0
      %v1260 = vsel %vm1196, 1, 0
      %v1261 = vsel %vm1197, 1, 0
      %v1262 = vsel %vm1198, 1, 0
      %v1263 = vsel %vm1199, 1, 0
      %v1264 = vsel %vm1200, 1, 0
      %v1265 = vsel %vm1201, 1, 0
      %v1266 = vsel %vm1202, 1, 0
      %v1267 = vsel %vm1203, 1, 0
      %v1268 = vsel %vm1204, 1, 0
      %v1269 = vsel %vm1205, 1, 0
      %v1270 = vsel %vm1206, 1, 0
      %v1271 = vsel %vm1207, 1, 0
      %v1272 = vsel %vm1208, 1, 0
      %v1273 = vsel %vm1209, 1, 0
      %v1274 = vsel %vm1210, 1, 0
      %v1275 = vsel %vm1211, 1, 0
      %v1276 = vsel %vm1212, 1, 0
      %v1277 = vsel %vm1213, 1, 0
      %v1278 = vsel %vm1214, 1, 0
      %v1279 = vsel %vm1215, 1, 0
      %v1280 = vsel %vm1216, 1, 0
      %v1281 = vsel %vm1217, 1, 0
      %v1282 = vsel %vm1218, 1, 0
      %v1283 = vsel %vm1219, 1, 0
      %v1284 = vsel %vm1220, 1, 0
      %v1285 = vsel %vm1221, 1, 0
      %v1286 = vsel %vm1222, 1, 0
      %v1287 = vsel %vm1223, 1, 0
      %v1288 = vsel %vm1224, 1, 0
      %v1289 = vsel %vm1225, 1, 0
      %v1290 = vsel %vm1226, 1, 0
      %v1291 = vsel %vm1227, 1, 0
      %v1292 = vsel %vm1228, 1, 0
      %v1293 = vsel %vm1229, 1, 0
      %v1294 = vsel %vm1230, 1, 0
      %v1295 = vsel %vm1231, 1, 0
      %v1296 = vsel %vm1232, 1, 0
      %v1297 = vsel %vm1233, 1, 0
      %v1298 = vsel %vm1234, 1, 0
      %v1299 = vsel %vm1235, 1, 0
      %v1300 = vsel %vm1236, 1, 0
      %v1301 = vcvt.s32.f32 %v1237
      %v1302 = vcvt.s32.f32 %v1238
      %v1303 = vcvt.s32.f32 %v1239
      %v1304 = vcvt.s32.f32 %v1240
      %v1305 = vcvt.s32.f32 %v1241
      %v1306 = vcvt.s32.f32 %v1242
      %v1307 = vcvt.s32.f32 %v1243
      %v1308 = vcvt.s32.f32 %v1244
      %v1309 = vcvt.s32.f32 %v1245
      %v1310 = vcvt.s32.f32 %v1246
      %v1311 = vcvt.s32.f32 %v1247
      %v1312 = vcvt.s32.f32 %v1248
      %v1313 = vcvt.s32.f32 %v1249
      %v1314 = vcvt.s32.f32 %v1250
      %v1315 = vcvt.s32.f32 %v1251
      %v1316 = vcvt.s32.f32 %v1252
      %v1317 = vcvt.s32.f32 %v1253
      %v1318 = vcvt.s32.f32 %v1254
      %v1319 = vcvt.s32.f32 %v1255
      %v1320 = vcvt.s32.f32 %v1256
      %v1321 = vcvt.s32.f32 %v1257
      %v1322 = vcvt.s32.f32 %v1258
      %v1323 = vcvt.s32.f32 %v1259
      %v1324 = vcvt.s32.f32 %v1260
      %v1325 = vcvt.s32.f32 %v1261
      %v1326 = vcvt.s32.f32 %v1262
      %v1327 = vcvt.s32.f32 %v1263
      %v1328 = vcvt.s32.f32 %v1264
      %v1329 = vcvt.s32.f32 %v1265
      %v1330 = vcvt.s32.f32 %v1266
      %v1331 = vcvt.s32.f32 %v1267
      %v1332 = vcvt.s32.f32 %v1268
      %v1333 = vcvt.s32.f32 %v1269
      %v1334 = vcvt.s32.f32 %v1270
      %v1335 = vcvt.s32.f32 %v1271
      %v1336 = vcvt.s32.f32 %v1272
      %v1337 = vcvt.s32.f32 %v1273
      %v1338 = vcvt.s32.f32 %v1274
      %v1339 = vcvt.s32.f32 %v1275
      %v1340 = vcvt.s32.f32 %v1276
      %v1341 = vcvt.s32.f32 %v1277
      %v1342 = vcvt.s32.f32 %v1278
      %v1343 = vcvt.s32.f32 %v1279
      %v1344 = vcvt.s32.f32 %v1280
      %v1345 = vcvt.s32.f32 %v1281
      %v1346 = vcvt.s32.f32 %v1282
      %v1347 = vcvt.s32.f32 %v1283
      %v1348 = vcvt.s32.f32 %v1284
      %v1349 = vcvt.s32.f32 %v1285
      %v1350 = vcvt.s32.f32 %v1286
      %v1351 = vcvt.s32.f32 %v1287
      %v1352 = vcvt.s32.f32 %v1288
      %v1353 = vcvt.s32.f32 %v1289
      %v1354 = vcvt.s32.f32 %v1290
      %v1355 = vcvt.s32.f32 %v1291
      %v1356 = vcvt.s32.f32 %v1292
      %v1357 = vcvt.s32.f32 %v1293
      %v1358 = vcvt.s32.f32 %v1294
      %v1359 = vcvt.s32.f32 %v1295
      %v1360 = vcvt.s32.f32 %v1296
      %v1361 = vcvt.s32.f32 %v1297
      %v1362 = vcvt.s32.f32 %v1298
      %v1363 = vcvt.s32.f32 %v1299
      %v1364 = vcvt.s32.f32 %v1300
      %v1365 = vld [vmem:[%s1] sm:$0xff]
      %v1366 = vld [vmem:[%s1 + $0x8] sm:$0xff]
      %v1367 = vld [vmem:[%s1 + $0x10] sm:$0xff]
      %v1368 = vld [vmem:[%s1 + $0x18] sm:$0xff]
      %v1369 = vld [vmem:[%s1 + $0x20] sm:$0xff]
      %v1370 = vld [vmem:[%s1 + $0x28] sm:$0xff]
      %v1371 = vld [vmem:[%s1 + $0x30] sm:$0xff]
      %v1372 = vld [vmem:[%s1 + $0x38] sm:$0xff]
      %v1373 = vld [vmem:[%s1 + $0x40] sm:$0xff]
      %v1374 = vld [vmem:[%s1 + $0x48] sm:$0xff]
      %v1375 = vld [vmem:[%s1 + $0x50] sm:$0xff]
      %v1376 = vld [vmem:[%s1 + $0x58] sm:$0xff]
      %v1377 = vld [vmem:[%s1 + $0x60] sm:$0xff]
      %v1378 = vld [vmem:[%s1 + $0x68] sm:$0xff]
      %v1379 = vld [vmem:[%s1 + $0x70] sm:$0xff]
      %v1380 = vld [vmem:[%s1 + $0x78] sm:$0xff]
      %1381 = vmatprep.subr.mxu0 0.0
      %1382 = vmatpush1.msra.mxu0 %v1380
      %1383 = vmatprep.subr.mxu0 0.0
      %1384 = vmatpush1.msra.mxu0 %v1379
      %1385 = vmatprep.subr.mxu0 0.0
      %1386 = vmatpush1.msra.mxu0 %v1378
      %1387 = vmatprep.subr.mxu0 0.0
      %1388 = vmatpush1.msra.mxu0 %v1377
      %1389 = vmatprep.subr.mxu0 0.0
      %1390 = vmatpush1.msra.mxu0 %v1376
      %1391 = vmatprep.subr.mxu0 0.0
      %1392 = vmatpush1.msra.mxu0 %v1375
      %1393 = vmatprep.subr.mxu0 0.0
      %1394 = vmatpush1.msra.mxu0 %v1374
      %1395 = vmatprep.subr.mxu0 0.0
      %1396 = vmatpush1.msra.mxu0 %v1373
      %1397 = vmatprep.subr.mxu0 0.0
      %1398 = vmatpush1.msra.mxu0 %v1372
      %1399 = vmatprep.subr.mxu0 0.0
      %1400 = vmatpush1.msra.mxu0 %v1371
      %1401 = vmatprep.subr.mxu0 0.0
      %1402 = vmatpush1.msra.mxu0 %v1370
      %1403 = vmatprep.subr.mxu0 0.0
      %1404 = vmatpush1.msra.mxu0 %v1369
      %1405 = vmatprep.subr.mxu0 0.0
      %1406 = vmatpush1.msra.mxu0 %v1368
      %1407 = vmatprep.subr.mxu0 0.0
      %1408 = vmatpush1.msra.mxu0 %v1367
      %1409 = vmatprep.subr.mxu0 0.0
      %1410 = vmatpush1.msra.mxu0 %v1366
      %1411 = vmatprep.subr.mxu0 0.0
      %1412 = vmatpush1.msra.mxu0 %v1365
      %1413 = vmatprep.subr.mxu0 0.0
      %1414 = vmatpush2.msra.mxu0 0.0
      %1415 = vmatprep.subr.mxu0 0.0
      %1416 = vmatpush2.msra.mxu0 0.0
      %1417 = vmatprep.subr.mxu0 0.0
      %1418 = vmatpush2.msra.mxu0 0.0
      %1419 = vmatprep.subr.mxu0 0.0
      %1420 = vmatpush2.msra.mxu0 0.0
      %1421 = vmatprep.subr.mxu0 0.0
      %1422 = vmatpush2.msra.mxu0 0.0
      %1423 = vmatprep.subr.mxu0 0.0
      %1424 = vmatpush2.msra.mxu0 0.0
      %1425 = vmatprep.subr.mxu0 0.0
      %1426 = vmatpush2.msra.mxu0 0.0
      %1427 = vmatprep.subr.mxu0 0.0
      %1428 = vmatpush2.msra.mxu0 0.0
      %1429 = vmatprep.subr.mxu0 0.0
      %1430 = vmatpush2.msra.mxu0 0.0
      %1431 = vmatprep.subr.mxu0 0.0
      %1432 = vmatpush2.msra.mxu0 0.0
      %1433 = vmatprep.subr.mxu0 0.0
      %1434 = vmatpush2.msra.mxu0 0.0
      %1435 = vmatprep.subr.mxu0 0.0
      %1436 = vmatpush2.msra.mxu0 0.0
      %1437 = vmatprep.subr.mxu0 0.0
      %1438 = vmatpush2.msra.mxu0 0.0
      %1439 = vmatprep.subr.mxu0 0.0
      %1440 = vmatpush2.msra.mxu0 0.0
      %1441 = vmatprep.subr.mxu0 0.0
      %1442 = vmatpush2.msra.mxu0 0.0
      %1443 = vmatprep.subr.mxu0 0.0
      %1444 = vmatpush2.msra.mxu0 0.0
      %1445 = vmatprep.mubr.f32.mxu0 0.0
      %1446 = vmatmul.mubr.f32.gmra.mxu0 %v1301
      %v1447 = vpop.f32.mrf.mxu0
      %v1448 = vadd.f32 0.0, %v1447
      %v1449 = vpop.f32.mrf.mxu0
      %1450 = vmatprep.mubr.f32.mxu0 0.0
      %1451 = vmatmul.mubr.f32.gmra.mxu0 %v1302
      %v1452 = vpop.f32.mrf.mxu0
      %v1453 = vadd.f32 0.0, %v1452
      %v1454 = vpop.f32.mrf.mxu0
      %1455 = vmatprep.mubr.f32.mxu0 0.0
      %1456 = vmatmul.mubr.f32.gmra.mxu0 %v1303
      %v1457 = vpop.f32.mrf.mxu0
      %v1458 = vadd.f32 0.0, %v1457
      %v1459 = vpop.f32.mrf.mxu0
      %1460 = vmatprep.mubr.f32.mxu0 0.0
      %1461 = vmatmul.mubr.f32.gmra.mxu0 %v1304
      %v1462 = vpop.f32.mrf.mxu0
      %v1463 = vadd.f32 0.0, %v1462
      %v1464 = vpop.f32.mrf.mxu0
      %1465 = vmatprep.mubr.f32.mxu0 0.0
      %1466 = vmatmul.mubr.f32.gmra.mxu0 %v1305
      %v1467 = vpop.f32.mrf.mxu0
      %v1468 = vadd.f32 0.0, %v1467
      %v1469 = vpop.f32.mrf.mxu0
      %1470 = vmatprep.mubr.f32.mxu0 0.0
      %1471 = vmatmul.mubr.f32.gmra.mxu0 %v1306
      %v1472 = vpop.f32.mrf.mxu0
      %v1473 = vadd.f32 0.0, %v1472
      %v1474 = vpop.f32.mrf.mxu0
      %1475 = vmatprep.mubr.f32.mxu0 0.0
      %1476 = vmatmul.mubr.f32.gmra.mxu0 %v1307
      %v1477 = vpop.f32.mrf.mxu0
      %v1478 = vadd.f32 0.0, %v1477
      %v1479 = vpop.f32.mrf.mxu0
      %1480 = vmatprep.mubr.f32.mxu0 0.0
      %1481 = vmatmul.mubr.f32.gmra.mxu0 %v1308
      %v1482 = vpop.f32.mrf.mxu0
      %v1483 = vadd.f32 0.0, %v1482
      %v1484 = vpop.f32.mrf.mxu0
      %1485 = vmatprep.mubr.f32.mxu0 0.0
      %1486 = vmatmul.mubr.f32.gmra.mxu0 %v1309
      %v1487 = vpop.f32.mrf.mxu0
      %v1488 = vadd.f32 0.0, %v1487
      %v1489 = vpop.f32.mrf.mxu0
      %1490 = vmatprep.mubr.f32.mxu0 0.0
      %1491 = vmatmul.mubr.f32.gmra.mxu0 %v1310
      %v1492 = vpop.f32.mrf.mxu0
      %v1493 = vadd.f32 0.0, %v1492
      %v1494 = vpop.f32.mrf.mxu0
      %1495 = vmatprep.mubr.f32.mxu0 0.0
      %1496 = vmatmul.mubr.f32.gmra.mxu0 %v1311
      %v1497 = vpop.f32.mrf.mxu0
      %v1498 = vadd.f32 0.0, %v1497
      %v1499 = vpop.f32.mrf.mxu0
      %1500 = vmatprep.mubr.f32.mxu0 0.0
      %1501 = vmatmul.mubr.f32.gmra.mxu0 %v1312
      %v1502 = vpop.f32.mrf.mxu0
      %v1503 = vadd.f32 0.0, %v1502
      %v1504 = vpop.f32.mrf.mxu0
      %1505 = vmatprep.mubr.f32.mxu0 0.0
      %1506 = vmatmul.mubr.f32.gmra.mxu0 %v1313
      %v1507 = vpop.f32.mrf.mxu0
      %v1508 = vadd.f32 0.0, %v1507
      %v1509 = vpop.f32.mrf.mxu0
      %1510 = vmatprep.mubr.f32.mxu0 0.0
      %1511 = vmatmul.mubr.f32.gmra.mxu0 %v1314
      %v1512 = vpop.f32.mrf.mxu0
      %v1513 = vadd.f32 0.0, %v1512
      %v1514 = vpop.f32.mrf.mxu0
      %1515 = vmatprep.mubr.f32.mxu0 0.0
      %1516 = vmatmul.mubr.f32.gmra.mxu0 %v1315
      %v1517 = vpop.f32.mrf.mxu0
      %v1518 = vadd.f32 0.0, %v1517
      %v1519 = vpop.f32.mrf.mxu0
      %1520 = vmatprep.mubr.f32.mxu0 0.0
      %1521 = vmatmul.mubr.f32.gmra.mxu0 %v1316
      %v1522 = vpop.f32.mrf.mxu0
      %v1523 = vadd.f32 0.0, %v1522
      %v1524 = vpop.f32.mrf.mxu0
      %1525 = vmatprep.mubr.f32.mxu0 0.0
      %1526 = vmatmul.mubr.f32.gmra.mxu0 %v1317
      %v1527 = vpop.f32.mrf.mxu0
      %v1528 = vadd.f32 0.0, %v1527
      %v1529 = vpop.f32.mrf.mxu0
      %1530 = vmatprep.mubr.f32.mxu0 0.0
      %1531 = vmatmul.mubr.f32.gmra.mxu0 %v1318
      %v1532 = vpop.f32.mrf.mxu0
      %v1533 = vadd.f32 0.0, %v1532
      %v1534 = vpop.f32.mrf.mxu0
      %1535 = vmatprep.mubr.f32.mxu0 0.0
      %1536 = vmatmul.mubr.f32.gmra.mxu0 %v1319
      %v1537 = vpop.f32.mrf.mxu0
      %v1538 = vadd.f32 0.0, %v1537
      %v1539 = vpop.f32.mrf.mxu0
      %1540 = vmatprep.mubr.f32.mxu0 0.0
      %1541 = vmatmul.mubr.f32.gmra.mxu0 %v1320
      %v1542 = vpop.f32.mrf.mxu0
      %v1543 = vadd.f32 0.0, %v1542
      %v1544 = vpop.f32.mrf.mxu0
      %1545 = vmatprep.mubr.f32.mxu0 0.0
      %1546 = vmatmul.mubr.f32.gmra.mxu0 %v1321
      %v1547 = vpop.f32.mrf.mxu0
      %v1548 = vadd.f32 0.0, %v1547
      %v1549 = vpop.f32.mrf.mxu0
      %1550 = vmatprep.mubr.f32.mxu0 0.0
      %1551 = vmatmul.mubr.f32.gmra.mxu0 %v1322
      %v1552 = vpop.f32.mrf.mxu0
      %v1553 = vadd.f32 0.0, %v1552
      %v1554 = vpop.f32.mrf.mxu0
      %1555 = vmatprep.mubr.f32.mxu0 0.0
      %1556 = vmatmul.mubr.f32.gmra.mxu0 %v1323
      %v1557 = vpop.f32.mrf.mxu0
      %v1558 = vadd.f32 0.0, %v1557
      %v1559 = vpop.f32.mrf.mxu0
      %1560 = vmatprep.mubr.f32.mxu0 0.0
      %1561 = vmatmul.mubr.f32.gmra.mxu0 %v1324
      %v1562 = vpop.f32.mrf.mxu0
      %v1563 = vadd.f32 0.0, %v1562
      %v1564 = vpop.f32.mrf.mxu0
      %1565 = vmatprep.mubr.f32.mxu0 0.0
      %1566 = vmatmul.mubr.f32.gmra.mxu0 %v1325
      %v1567 = vpop.f32.mrf.mxu0
      %v1568 = vadd.f32 0.0, %v1567
      %v1569 = vpop.f32.mrf.mxu0
      %1570 = vmatprep.mubr.f32.mxu0 0.0
      %1571 = vmatmul.mubr.f32.gmra.mxu0 %v1326
      %v1572 = vpop.f32.mrf.mxu0
      %v1573 = vadd.f32 0.0, %v1572
      %v1574 = vpop.f32.mrf.mxu0
      %1575 = vmatprep.mubr.f32.mxu0 0.0
      %1576 = vmatmul.mubr.f32.gmra.mxu0 %v1327
      %v1577 = vpop.f32.mrf.mxu0
      %v1578 = vadd.f32 0.0, %v1577
      %v1579 = vpop.f32.mrf.mxu0
      %1580 = vmatprep.mubr.f32.mxu0 0.0
      %1581 = vmatmul.mubr.f32.gmra.mxu0 %v1328
      %v1582 = vpop.f32.mrf.mxu0
      %v1583 = vadd.f32 0.0, %v1582
      %v1584 = vpop.f32.mrf.mxu0
      %1585 = vmatprep.mubr.f32.mxu0 0.0
      %1586 = vmatmul.mubr.f32.gmra.mxu0 %v1329
      %v1587 = vpop.f32.mrf.mxu0
      %v1588 = vadd.f32 0.0, %v1587
      %v1589 = vpop.f32.mrf.mxu0
      %1590 = vmatprep.mubr.f32.mxu0 0.0
      %1591 = vmatmul.mubr.f32.gmra.mxu0 %v1330
      %v1592 = vpop.f32.mrf.mxu0
      %v1593 = vadd.f32 0.0, %v1592
      %v1594 = vpop.f32.mrf.mxu0
      %1595 = vmatprep.mubr.f32.mxu0 0.0
      %1596 = vmatmul.mubr.f32.gmra.mxu0 %v1331
      %v1597 = vpop.f32.mrf.mxu0
      %v1598 = vadd.f32 0.0, %v1597
      %v1599 = vpop.f32.mrf.mxu0
      %1600 = vmatprep.mubr.f32.mxu0 0.0
      %1601 = vmatmul.mubr.f32.gmra.mxu0 %v1332
      %v1602 = vpop.f32.mrf.mxu0
      %v1603 = vadd.f32 0.0, %v1602
      %v1604 = vpop.f32.mrf.mxu0
      %1605 = vmatprep.mubr.f32.mxu0 0.0
      %1606 = vmatmul.mubr.f32.gmra.mxu0 %v1333
      %v1607 = vpop.f32.mrf.mxu0
      %v1608 = vadd.f32 0.0, %v1607
      %v1609 = vpop.f32.mrf.mxu0
      %1610 = vmatprep.mubr.f32.mxu0 0.0
      %1611 = vmatmul.mubr.f32.gmra.mxu0 %v1334
      %v1612 = vpop.f32.mrf.mxu0
      %v1613 = vadd.f32 0.0, %v1612
      %v1614 = vpop.f32.mrf.mxu0
      %1615 = vmatprep.mubr.f32.mxu0 0.0
      %1616 = vmatmul.mubr.f32.gmra.mxu0 %v1335
      %v1617 = vpop.f32.mrf.mxu0
      %v1618 = vadd.f32 0.0, %v1617
      %v1619 = vpop.f32.mrf.mxu0
      %1620 = vmatprep.mubr.f32.mxu0 0.0
      %1621 = vmatmul.mubr.f32.gmra.mxu0 %v1336
      %v1622 = vpop.f32.mrf.mxu0
      %v1623 = vadd.f32 0.0, %v1622
      %v1624 = vpop.f32.mrf.mxu0
      %1625 = vmatprep.mubr.f32.mxu0 0.0
      %1626 = vmatmul.mubr.f32.gmra.mxu0 %v1337
      %v1627 = vpop.f32.mrf.mxu0
      %v1628 = vadd.f32 0.0, %v1627
      %v1629 = vpop.f32.mrf.mxu0
      %1630 = vmatprep.mubr.f32.mxu0 0.0
      %1631 = vmatmul.mubr.f32.gmra.mxu0 %v1338
      %v1632 = vpop.f32.mrf.mxu0
      %v1633 = vadd.f32 0.0, %v1632
      %v1634 = vpop.f32.mrf.mxu0
      %1635 = vmatprep.mubr.f32.mxu0 0.0
      %1636 = vmatmul.mubr.f32.gmra.mxu0 %v1339
      %v1637 = vpop.f32.mrf.mxu0
      %v1638 = vadd.f32 0.0, %v1637
      %v1639 = vpop.f32.mrf.mxu0
      %1640 = vmatprep.mubr.f32.mxu0 0.0
      %1641 = vmatmul.mubr.f32.gmra.mxu0 %v1340
      %v1642 = vpop.f32.mrf.mxu0
      %v1643 = vadd.f32 0.0, %v1642
      %v1644 = vpop.f32.mrf.mxu0
      %1645 = vmatprep.mubr.f32.mxu0 0.0
      %1646 = vmatmul.mubr.f32.gmra.mxu0 %v1341
      %v1647 = vpop.f32.mrf.mxu0
      %v1648 = vadd.f32 0.0, %v1647
      %v1649 = vpop.f32.mrf.mxu0
      %1650 = vmatprep.mubr.f32.mxu0 0.0
      %1651 = vmatmul.mubr.f32.gmra.mxu0 %v1342
      %v1652 = vpop.f32.mrf.mxu0
      %v1653 = vadd.f32 0.0, %v1652
      %v1654 = vpop.f32.mrf.mxu0
      %1655 = vmatprep.mubr.f32.mxu0 0.0
      %1656 = vmatmul.mubr.f32.gmra.mxu0 %v1343
      %v1657 = vpop.f32.mrf.mxu0
      %v1658 = vadd.f32 0.0, %v1657
      %v1659 = vpop.f32.mrf.mxu0
      %1660 = vmatprep.mubr.f32.mxu0 0.0
      %1661 = vmatmul.mubr.f32.gmra.mxu0 %v1344
      %v1662 = vpop.f32.mrf.mxu0
      %v1663 = vadd.f32 0.0, %v1662
      %v1664 = vpop.f32.mrf.mxu0
      %1665 = vmatprep.mubr.f32.mxu0 0.0
      %1666 = vmatmul.mubr.f32.gmra.mxu0 %v1345
      %v1667 = vpop.f32.mrf.mxu0
      %v1668 = vadd.f32 0.0, %v1667
      %v1669 = vpop.f32.mrf.mxu0
      %1670 = vmatprep.mubr.f32.mxu0 0.0
      %1671 = vmatmul.mubr.f32.gmra.mxu0 %v1346
      %v1672 = vpop.f32.mrf.mxu0
      %v1673 = vadd.f32 0.0, %v1672
      %v1674 = vpop.f32.mrf.mxu0
      %1675 = vmatprep.mubr.f32.mxu0 0.0
      %1676 = vmatmul.mubr.f32.gmra.mxu0 %v1347
      %v1677 = vpop.f32.mrf.mxu0
      %v1678 = vadd.f32 0.0, %v1677
      %v1679 = vpop.f32.mrf.mxu0
      %1680 = vmatprep.mubr.f32.mxu0 0.0
      %1681 = vmatmul.mubr.f32.gmra.mxu0 %v1348
      %v1682 = vpop.f32.mrf.mxu0
      %v1683 = vadd.f32 0.0, %v1682
      %v1684 = vpop.f32.mrf.mxu0
      %1685 = vmatprep.mubr.f32.mxu0 0.0
      %1686 = vmatmul.mubr.f32.gmra.mxu0 %v1349
      %v1687 = vpop.f32.mrf.mxu0
      %v1688 = vadd.f32 0.0, %v1687
      %v1689 = vpop.f32.mrf.mxu0
      %1690 = vmatprep.mubr.f32.mxu0 0.0
      %1691 = vmatmul.mubr.f32.gmra.mxu0 %v1350
      %v1692 = vpop.f32.mrf.mxu0
      %v1693 = vadd.f32 0.0, %v1692
      %v1694 = vpop.f32.mrf.mxu0
      %1695 = vmatprep.mubr.f32.mxu0 0.0
      %1696 = vmatmul.mubr.f32.gmra.mxu0 %v1351
      %v1697 = vpop.f32.mrf.mxu0
      %v1698 = vadd.f32 0.0, %v1697
      %v1699 = vpop.f32.mrf.mxu0
      %1700 = vmatprep.mubr.f32.mxu0 0.0
      %1701 = vmatmul.mubr.f32.gmra.mxu0 %v1352
      %v1702 = vpop.f32.mrf.mxu0
      %v1703 = vadd.f32 0.0, %v1702
      %v1704 = vpop.f32.mrf.mxu0
      %1705 = vmatprep.mubr.f32.mxu0 0.0
      %1706 = vmatmul.mubr.f32.gmra.mxu0 %v1353
      %v1707 = vpop.f32.mrf.mxu0
      %v1708 = vadd.f32 0.0, %v1707
      %v1709 = vpop.f32.mrf.mxu0
      %1710 = vmatprep.mubr.f32.mxu0 0.0
      %1711 = vmatmul.mubr.f32.gmra.mxu0 %v1354
      %v1712 = vpop.f32.mrf.mxu0
      %v1713 = vadd.f32 0.0, %v1712
      %v1714 = vpop.f32.mrf.mxu0
      %1715 = vmatprep.mubr.f32.mxu0 0.0
      %1716 = vmatmul.mubr.f32.gmra.mxu0 %v1355
      %v1717 = vpop.f32.mrf.mxu0
      %v1718 = vadd.f32 0.0, %v1717
      %v1719 = vpop.f32.mrf.mxu0
      %1720 = vmatprep.mubr.f32.mxu0 0.0
      %1721 = vmatmul.mubr.f32.gmra.mxu0 %v1356
      %v1722 = vpop.f32.mrf.mxu0
      %v1723 = vadd.f32 0.0, %v1722
      %v1724 = vpop.f32.mrf.mxu0
      %1725 = vmatprep.mubr.f32.mxu0 0.0
      %1726 = vmatmul.mubr.f32.gmra.mxu0 %v1357
      %v1727 = vpop.f32.mrf.mxu0
      %v1728 = vadd.f32 0.0, %v1727
      %v1729 = vpop.f32.mrf.mxu0
      %1730 = vmatprep.mubr.f32.mxu0 0.0
      %1731 = vmatmul.mubr.f32.gmra.mxu0 %v1358
      %v1732 = vpop.f32.mrf.mxu0
      %v1733 = vadd.f32 0.0, %v1732
      %v1734 = vpop.f32.mrf.mxu0
      %1735 = vmatprep.mubr.f32.mxu0 0.0
      %1736 = vmatmul.mubr.f32.gmra.mxu0 %v1359
      %v1737 = vpop.f32.mrf.mxu0
      %v1738 = vadd.f32 0.0, %v1737
      %v1739 = vpop.f32.mrf.mxu0
      %1740 = vmatprep.mubr.f32.mxu0 0.0
      %1741 = vmatmul.mubr.f32.gmra.mxu0 %v1360
      %v1742 = vpop.f32.mrf.mxu0
      %v1743 = vadd.f32 0.0, %v1742
      %v1744 = vpop.f32.mrf.mxu0
      %1745 = vmatprep.mubr.f32.mxu0 0.0
      %1746 = vmatmul.mubr.f32.gmra.mxu0 %v1361
      %v1747 = vpop.f32.mrf.mxu0
      %v1748 = vadd.f32 0.0, %v1747
      %v1749 = vpop.f32.mrf.mxu0
      %1750 = vmatprep.mubr.f32.mxu0 0.0
      %1751 = vmatmul.mubr.f32.gmra.mxu0 %v1362
      %v1752 = vpop.f32.mrf.mxu0
      %v1753 = vadd.f32 0.0, %v1752
      %v1754 = vpop.f32.mrf.mxu0
      %1755 = vmatprep.mubr.f32.mxu0 0.0
      %1756 = vmatmul.mubr.f32.gmra.mxu0 %v1363
      %v1757 = vpop.f32.mrf.mxu0
      %v1758 = vadd.f32 0.0, %v1757
      %v1759 = vpop.f32.mrf.mxu0
      %1760 = vmatprep.mubr.f32.mxu0 0.0
      %1761 = vmatmul.mubr.f32.gmra.mxu0 %v1364
      %v1762 = vpop.f32.mrf.mxu0
      %v1763 = vadd.f32 0.0, %v1762
      %v1764 = vpop.f32.mrf.mxu0
      %1765 = vdwg.mxu0
      %vm1766 = vcmask 785408
      %1767 = vst.msk [vmem:[%s145] sm:$0xff] %vm1766, %v1448
      %1768 = vst.msk [vmem:[%s145 + $0x8] sm:$0xff] %vm1766, %v1453
      %1769 = vst.msk [vmem:[%s145 + $0x10] sm:$0xff] %vm1766, %v1458
      %1770 = vst.msk [vmem:[%s145 + $0x18] sm:$0xff] %vm1766, %v1463
      %1771 = vst.msk [vmem:[%s145 + $0x20] sm:$0xff] %vm1766, %v1468
      %1772 = vst.msk [vmem:[%s145 + $0x28] sm:$0xff] %vm1766, %v1473
      %1773 = vst.msk [vmem:[%s145 + $0x30] sm:$0xff] %vm1766, %v1478
      %1774 = vst.msk [vmem:[%s145 + $0x38] sm:$0xff] %vm1766, %v1483
      %1775 = vst.msk [vmem:[%s145 + $0x40] sm:$0xff] %vm1766, %v1488
      %1776 = vst.msk [vmem:[%s145 + $0x48] sm:$0xff] %vm1766, %v1493
      %1777 = vst.msk [vmem:[%s145 + $0x50] sm:$0xff] %vm1766, %v1498
      %1778 = vst.msk [vmem:[%s145 + $0x58] sm:$0xff] %vm1766, %v1503
      %1779 = vst.msk [vmem:[%s145 + $0x60] sm:$0xff] %vm1766, %v1508
      %1780 = vst.msk [vmem:[%s145 + $0x68] sm:$0xff] %vm1766, %v1513
      %1781 = vst.msk [vmem:[%s145 + $0x70] sm:$0xff] %vm1766, %v1518
      %1782 = vst.msk [vmem:[%s145 + $0x78] sm:$0xff] %vm1766, %v1523
      %1783 = vst.msk [vmem:[%s145 + $0x80] sm:$0xff] %vm1766, %v1528
      %1784 = vst.msk [vmem:[%s145 + $0x88] sm:$0xff] %vm1766, %v1533
      %1785 = vst.msk [vmem:[%s145 + $0x90] sm:$0xff] %vm1766, %v1538
      %1786 = vst.msk [vmem:[%s145 + $0x98] sm:$0xff] %vm1766, %v1543
      %1787 = vst.msk [vmem:[%s145 + $0xa0] sm:$0xff] %vm1766, %v1548
      %1788 = vst.msk [vmem:[%s145 + $0xa8] sm:$0xff] %vm1766, %v1553
      %1789 = vst.msk [vmem:[%s145 + $0xb0] sm:$0xff] %vm1766, %v1558
      %1790 = vst.msk [vmem:[%s145 + $0xb8] sm:$0xff] %vm1766, %v1563
      %1791 = vst.msk [vmem:[%s145 + $0xc0] sm:$0xff] %vm1766, %v1568
      %1792 = vst.msk [vmem:[%s145 + $0xc8] sm:$0xff] %vm1766, %v1573
      %1793 = vst.msk [vmem:[%s145 + $0xd0] sm:$0xff] %vm1766, %v1578
      %1794 = vst.msk [vmem:[%s145 + $0xd8] sm:$0xff] %vm1766, %v1583
      %1795 = vst.msk [vmem:[%s145 + $0xe0] sm:$0xff] %vm1766, %v1588
      %1796 = vst.msk [vmem:[%s145 + $0xe8] sm:$0xff] %vm1766, %v1593
      %1797 = vst.msk [vmem:[%s145 + $0xf0] sm:$0xff] %vm1766, %v1598
      %1798 = vst.msk [vmem:[%s145 + $0xf8] sm:$0xff] %vm1766, %v1603
      %1799 = vst.msk [vmem:[%s145 + $0x100] sm:$0xff] %vm1766, %v1608
      %1800 = vst.msk [vmem:[%s145 + $0x108] sm:$0xff] %vm1766, %v1613
      %1801 = vst.msk [vmem:[%s145 + $0x110] sm:$0xff] %vm1766, %v1618
      %1802 = vst.msk [vmem:[%s145 + $0x118] sm:$0xff] %vm1766, %v1623
      %1803 = vst.msk [vmem:[%s145 + $0x120] sm:$0xff] %vm1766, %v1628
      %1804 = vst.msk [vmem:[%s145 + $0x128] sm:$0xff] %vm1766, %v1633
      %1805 = vst.msk [vmem:[%s145 + $0x130] sm:$0xff] %vm1766, %v1638
      %1806 = vst.msk [vmem:[%s145 + $0x138] sm:$0xff] %vm1766, %v1643
      %1807 = vst.msk [vmem:[%s145 + $0x140] sm:$0xff] %vm1766, %v1648
      %1808 = vst.msk [vmem:[%s145 + $0x148] sm:$0xff] %vm1766, %v1653
      %1809 = vst.msk [vmem:[%s145 + $0x150] sm:$0xff] %vm1766, %v1658
      %1810 = vst.msk [vmem:[%s145 + $0x158] sm:$0xff] %vm1766, %v1663
      %1811 = vst.msk [vmem:[%s145 + $0x160] sm:$0xff] %vm1766, %v1668
      %1812 = vst.msk [vmem:[%s145 + $0x168] sm:$0xff] %vm1766, %v1673
      %1813 = vst.msk [vmem:[%s145 + $0x170] sm:$0xff] %vm1766, %v1678
      %1814 = vst.msk [vmem:[%s145 + $0x178] sm:$0xff] %vm1766, %v1683
      %1815 = vst.msk [vmem:[%s145 + $0x180] sm:$0xff] %vm1766, %v1688
      %1816 = vst.msk [vmem:[%s145 + $0x188] sm:$0xff] %vm1766, %v1693
      %1817 = vst.msk [vmem:[%s145 + $0x190] sm:$0xff] %vm1766, %v1698
      %1818 = vst.msk [vmem:[%s145 + $0x198] sm:$0xff] %vm1766, %v1703
      %1819 = vst.msk [vmem:[%s145 + $0x1a0] sm:$0xff] %vm1766, %v1708
      %1820 = vst.msk [vmem:[%s145 + $0x1a8] sm:$0xff] %vm1766, %v1713
      %1821 = vst.msk [vmem:[%s145 + $0x1b0] sm:$0xff] %vm1766, %v1718
      %1822 = vst.msk [vmem:[%s145 + $0x1b8] sm:$0xff] %vm1766, %v1723
      %1823 = vst.msk [vmem:[%s145 + $0x1c0] sm:$0xff] %vm1766, %v1728
      %1824 = vst.msk [vmem:[%s145 + $0x1c8] sm:$0xff] %vm1766, %v1733
      %1825 = vst.msk [vmem:[%s145 + $0x1d0] sm:$0xff] %vm1766, %v1738
      %1826 = vst.msk [vmem:[%s145 + $0x1d8] sm:$0xff] %vm1766, %v1743
      %1827 = vst.msk [vmem:[%s145 + $0x1e0] sm:$0xff] %vm1766, %v1748
      %1828 = vst.msk [vmem:[%s145 + $0x1e8] sm:$0xff] %vm1766, %v1753
      %1829 = vst.msk [vmem:[%s145 + $0x1f0] sm:$0xff] %vm1766, %v1758
      %1830 = vst.msk [vmem:[%s145 + $0x1f8] sm:$0xff] %vm1766, %v1763
      %s1831 = smul.u32 64, %s13
      %p1832 = scmp.lt.s32.totalorder %s1831, 255
      %s1833 = scalar_select %p1832, %s1831, 255
      %s1834 = smul.addr %s1833, 8
      %s1835 = scalar_lea.vmem %s2, %s1834
      // Predicated region
      $region29: #{tpu_custom_call.1} parent=27 // pred_check
        %p1836 = pneg %p78
      $region30: #{tpu_custom_call.1} parent=27 // pred_check_branch
        %1838 = sbr.rel (%p1836) target = $region32
      $region31: #{tpu_custom_call.1} parent=27 // pred_region
        %s1839 = smul.u32 64, %s13
      $region32: #{tpu_custom_call.1} parent=27 // pred_fallthru
        _
    $region28: #{tpu_custom_call.1} parent=5 // pred_fallthru
      _
    %p1840 = scmp.le.s32.totalorder 2, %s8
    // Predicated region
    $region33: #{tpu_custom_call.1} parent=5 // pred_check
      %p1841 = pneg %p1840
    $region34: #{tpu_custom_call.1} parent=5 // pred_check_branch
      %1843 = sbr.rel (%p1841) target = $region36
    $region35: #{tpu_custom_call.1} parent=5 // pred_region
      %s1844 = ssub.s32 %s8, 2
      // Predicated region
      $region37: #{tpu_custom_call.1} parent=35 // pred_check
        %p1845 = pneg %p84
      $region38: #{tpu_custom_call.1} parent=35 // pred_check_branch
        %1847 = sbr.rel (%p1845) target = $region40
      $region39: #{tpu_custom_call.1} parent=35 // pred_region
        %s1848 = smul.u32 64, %s14
        %p1849 = scmp.lt.s32.totalorder %s1848, 255
        %s1850 = scalar_select %p1849, %s1848, 255
        %s1851 = smul.addr %s1850, 8
        %s1852 = scalar_lea.vmem %s2, %s1851
      $region40: #{tpu_custom_call.1} parent=35 // pred_fallthru
        _
    $region36: #{tpu_custom_call.1} parent=5 // pred_fallthru
      _
  $region6: #{tpu_custom_call.1} parent=0 // loop_footer
    %s12 = sadd.s32 1, %s8
  $region7: #{tpu_custom_call.1} parent=0 // loop_footer_branch
    %7 = sbr.rel target = $region3
  $region8: #{tpu_custom_call.1} parent=0 // loop_exit
    _

</llo_original>
